<compile_context>
chip_gen: v5e
topology: v5e:2x2
jax: 0.10.0
libtpu: 0.0.40
codegen_flags: <defaults>
</compile_context>

<pallas_src>
import math
import jax
import jax.numpy as jnp
from jax.experimental import pallas as pl

# Small synthetic GPT-2 config (same structure as GPT2ForSequenceClassification)
B, T = 2, 8             # batch, sequence length
D, H, L = 32, 4, 2      # hidden size, attention heads, layers
DH = D // H
FF = 4 * D
N = B * T
VOCAB, MAXPOS = 64, 16
NUM_LABELS = 2
PAD_ID = VOCAB - 1
EPS = 1e-5
NEG = -1e9
SCALE = 1.0 / math.sqrt(DH)
GELU_C = math.sqrt(2.0 / math.pi)
OUT_LANES = 128         # lane-dense padded width for the logits output


def _layernorm(x, w, b):
    mu = jnp.mean(x, axis=-1, keepdims=True)
    xc = x - mu
    var = jnp.mean(xc * xc, axis=-1, keepdims=True)
    return xc * jax.lax.rsqrt(var + EPS) * w + b


def _gelu_new(x):
    # GPT-2 "gelu_new" (tanh approximation); f32 math (v5e has no bf16 VPU/EUP)
    return 0.5 * x * (1.0 + jnp.tanh(GELU_C * (x + 0.044715 * x * x * x)))


def gpt2_kernel(x_ref, bias_ref, sel_ref,
                lnp_ref, wqkv_ref, bqkv_ref, wap_ref,
                wfc_ref, bfc_ref, wmp_ref,
                lnf_ref, score_ref,
                out_ref):
    hid = x_ref[...]                 # (N, D) f32 hidden slab, kept live in vregs/VMEM
    bias = bias_ref[...]             # (H*B, T, T) f32 combined causal + pad additive bias

    for l in range(L):               # static unroll over layers (L = 2)
        lnp = lnp_ref[l]             # (6, D): [ln1w, ln1b, ln2w, ln2b, b_attn_proj, b_mlp_proj]

        # ---------------- attention: fused QKV projection (one MXU dot) ----------------
        a1 = _layernorm(hid, lnp[0:1, :], lnp[1:2, :]).astype(jnp.bfloat16)
        qkv = (jnp.dot(a1, wqkv_ref[l], preferred_element_type=jnp.float32)
               + bqkv_ref[l])                                               # (N, 3D) f32

        def lead_heads(base):
            # stack the H per-head lane slices on the leading axis (h-major, b-minor)
            return jnp.concatenate(
                [qkv[:, base + h * DH: base + (h + 1) * DH].reshape(B, T, DH)
                 for h in range(H)], axis=0).astype(jnp.bfloat16)           # (H*B, T, DH)

        qh = lead_heads(0)
        kh = lead_heads(D)
        vh = lead_heads(2 * D)

        # one batched score matmul + ONE softmax + one batched context matmul
        s = jnp.einsum('nqd,nkd->nqk', qh, kh,
                       preferred_element_type=jnp.float32) * SCALE + bias   # (H*B, T, T)
        s = s - jnp.max(s, axis=-1, keepdims=True)
        p = jnp.exp(s)
        p = p * pl.reciprocal(jnp.sum(p, axis=-1, keepdims=True), approx=True)
        ctx = jnp.einsum('nqk,nkd->nqd', p.astype(jnp.bfloat16), vh,
                         preferred_element_type=jnp.float32)                # (H*B, T, DH)
        ctx = jnp.concatenate([ctx[h * B:(h + 1) * B] for h in range(H)],
                              axis=-1).reshape(N, D).astype(jnp.bfloat16)   # (N, D) bf16
        hid = hid + (jnp.dot(ctx, wap_ref[l], preferred_element_type=jnp.float32)
                     + lnp[4:5, :])

        # ---------------- MLP ----------------
        a2 = _layernorm(hid, lnp[2:3, :], lnp[3:4, :]).astype(jnp.bfloat16)
        f = jnp.dot(a2, wfc_ref[l], preferred_element_type=jnp.float32) + bfc_ref[l]
        g = _gelu_new(f).astype(jnp.bfloat16)
        hid = hid + (jnp.dot(g, wmp_ref[l], preferred_element_type=jnp.float32)
                     + lnp[5:6, :])

    # ---- last-non-pad-token pooling (one-hot selector matmul) + final LN + score head ----
    pooled = jnp.dot(sel_ref[...], hid, preferred_element_type=jnp.float32)  # (B, D) f32
    pooled = _layernorm(pooled, lnf_ref[0:1, :], lnf_ref[1:2, :])
    out_ref[...] = jnp.dot(pooled.astype(jnp.bfloat16), score_ref[...],
                           preferred_element_type=jnp.float32)               # (B, 128)


def gpt2_forward(input_ids, attn_mask, params):
    # embeddings (glue)
    pos = jnp.arange(T)
    x = params["wte"][input_ids] + params["wpe"][pos][None, :, :]            # (B, T, D)
    x2 = x.reshape(N, D)

    # combined causal + padding additive bias, precomputed once, (head, batch)-major
    rows = jnp.arange(T)[:, None]
    cols = jnp.arange(T)[None, :]
    causal_bias = jnp.where(cols <= rows, 0.0, NEG).astype(jnp.float32)      # (T, T)
    pad_bias = ((1.0 - attn_mask.astype(jnp.float32)) * NEG)[:, None, :]     # (B, 1, T)
    bias_bt = causal_bias[None, :, :] + pad_bias                             # (B, T, T)
    bias_hb = jnp.tile(bias_bt, (H, 1, 1))                                   # (H*B, T, T)

    # HF GPT2ForSequenceClassification pooling index: argmax(eq(pad)) - 1, mod T
    seq_pos = ((jnp.argmax(jnp.equal(input_ids, PAD_ID).astype(jnp.int32), axis=-1) - 1)
               % T).astype(jnp.int32)                                        # (B,)
    sel = (jnp.arange(N)[None, :] ==
           (jnp.arange(B) * T + seq_pos)[:, None]).astype(jnp.float32)       # (B, N) one-hot

    bf = lambda a: a.astype(jnp.bfloat16)
    # pack the ten tiny (1,D) per-layer params into one (L, 6, D) stack
    lnp = jnp.concatenate([params["ln1w"], params["ln1b"],
                           params["ln2w"], params["ln2b"],
                           params["bap"], params["bmp"]], axis=1)            # (L, 6, D)
    lnf = jnp.concatenate([params["lnfw"], params["lnfb"]], axis=0)          # (2, D)
    score_pad = jnp.zeros((D, OUT_LANES), jnp.bfloat16).at[:, :NUM_LABELS].set(
        bf(params["score"]))

    padded_logits = pl.pallas_call(
        gpt2_kernel,
        out_shape=jax.ShapeDtypeStruct((B, OUT_LANES), jnp.float32),
    )(x2, bias_hb, sel,
      lnp, bf(params["wqkv"]), params["bqkv"], bf(params["wap"]),
      bf(params["wfc"]), params["bfc"], bf(params["wmp"]),
      lnf, score_pad)

    return padded_logits[:, :NUM_LABELS]                                     # (B, NUM_LABELS)


def init_params(key):
    ks = jax.random.split(key, 8)
    n = lambda k, shape: 0.02 * jax.random.normal(k, shape, jnp.float32)
    return dict(
        wte=n(ks[0], (VOCAB, D)),
        wpe=n(ks[1], (MAXPOS, D)),
        ln1w=jnp.ones((L, 1, D), jnp.float32), ln1b=jnp.zeros((L, 1, D), jnp.float32),
        wqkv=n(ks[2], (L, D, 3 * D)), bqkv=jnp.zeros((L, 1, 3 * D), jnp.float32),
        wap=n(ks[3], (L, D, D)), bap=jnp.zeros((L, 1, D), jnp.float32),
        ln2w=jnp.ones((L, 1, D), jnp.float32), ln2b=jnp.zeros((L, 1, D), jnp.float32),
        wfc=n(ks[4], (L, D, FF)), bfc=jnp.zeros((L, 1, FF), jnp.float32),
        wmp=n(ks[5], (L, FF, D)), bmp=jnp.zeros((L, 1, D), jnp.float32),
        lnfw=jnp.ones((1, D), jnp.float32), lnfb=jnp.zeros((1, D), jnp.float32),
        score=n(ks[6], (D, NUM_LABELS)),
    )


if __name__ == "__main__":
    key = jax.random.PRNGKey(0)
    pkey, ikey = jax.random.split(key)
    params = init_params(pkey)

    input_ids = jax.random.randint(ikey, (B, T), 0, VOCAB - 1, dtype=jnp.int32)
    input_ids = input_ids.at[1, 5:].set(PAD_ID)                 # pad tail of sequence 1
    attn_mask = jnp.ones((B, T), jnp.int32).at[1, 5:].set(0)

    logits = jax.jit(lambda i, m: gpt2_forward(i, m, params))(input_ids, attn_mask)
    jax.block_until_ready(logits)
    assert logits.shape == (B, NUM_LABELS) and logits.dtype == jnp.float32
    print("KERNEL_OK")
</pallas_src>

<mosaic_0001>
module attributes {stable_mosaic.version = 11 : i64} {
  func.func @gpt2_kernel(%arg0: memref<16x32xf32, #tpu.memory_space<vmem>>, %arg1: memref<8x8x8xf32, #tpu.memory_space<vmem>>, %arg2: memref<2x16xf32, #tpu.memory_space<vmem>>, %arg3: memref<2x6x32xf32, #tpu.memory_space<vmem>>, %arg4: memref<2x32x96xbf16, #tpu.memory_space<vmem>>, %arg5: memref<2x1x96xf32, #tpu.memory_space<vmem>>, %arg6: memref<2x32x32xbf16, #tpu.memory_space<vmem>>, %arg7: memref<2x32x128xbf16, #tpu.memory_space<vmem>>, %arg8: memref<2x1x128xf32, #tpu.memory_space<vmem>>, %arg9: memref<2x128x32xbf16, #tpu.memory_space<vmem>>, %arg10: memref<2x32xf32, #tpu.memory_space<vmem>>, %arg11: memref<32x128xbf16, #tpu.memory_space<vmem>>, %arg12: memref<2x128xf32, #tpu.memory_space<vmem>>) attributes {dimension_semantics = [], scalar_prefetch = 0 : i64, scratch_operands = 0 : i64, tpu.core_type = #tpu.core_type<tc>} {
    %c0 = arith.constant 0 : index
    %c0_0 = arith.constant 0 : index
    %0 = vector.load %arg0[%c0, %c0_0] : memref<16x32xf32, #tpu.memory_space<vmem>>, vector<16x32xf32>
    %c0_1 = arith.constant 0 : index
    %c0_2 = arith.constant 0 : index
    %c0_3 = arith.constant 0 : index
    %1 = vector.load %arg1[%c0_1, %c0_2, %c0_3] : memref<8x8x8xf32, #tpu.memory_space<vmem>>, vector<8x8x8xf32>
    %c0_4 = arith.constant 0 : index
    %c0_5 = arith.constant 0 : index
    %c0_6 = arith.constant 0 : index
    %2 = vector.load %arg3[%c0_4, %c0_5, %c0_6] : memref<2x6x32xf32, #tpu.memory_space<vmem>>, vector<1x6x32xf32>
    %3 = vector.shape_cast %2 : vector<1x6x32xf32> to vector<6x32xf32>
    %4 = vector.extract_strided_slice %3 {offsets = [0, 0], sizes = [1, 32], strides = [1, 1]} : vector<6x32xf32> to vector<1x32xf32>
    %5 = vector.extract_strided_slice %3 {offsets = [1, 0], sizes = [1, 32], strides = [1, 1]} : vector<6x32xf32> to vector<1x32xf32>
    %cst = arith.constant dense<0.000000e+00> : vector<16xf32>
    %6 = vector.multi_reduction <add>, %0, %cst [1] : vector<16x32xf32> to vector<16xf32>
    %7 = vector.shape_cast %6 : vector<16xf32> to vector<16x1xf32>
    %cst_7 = arith.constant 3.200000e+01 : f32
    %8 = vector.broadcast %cst_7 : f32 to vector<16x1xf32>
    %9 = arith.divf %7, %8 : vector<16x1xf32>
    %10 = vector.broadcast %9 : vector<16x1xf32> to vector<16x32xf32>
    %11 = arith.subf %0, %10 : vector<16x32xf32>
    %12 = arith.mulf %11, %11 : vector<16x32xf32>
    %cst_8 = arith.constant dense<0.000000e+00> : vector<16xf32>
    %13 = vector.multi_reduction <add>, %12, %cst_8 [1] : vector<16x32xf32> to vector<16xf32>
    %14 = vector.shape_cast %13 : vector<16xf32> to vector<16x1xf32>
    %cst_9 = arith.constant 3.200000e+01 : f32
    %15 = vector.broadcast %cst_9 : f32 to vector<16x1xf32>
    %16 = arith.divf %14, %15 : vector<16x1xf32>
    %cst_10 = arith.constant 9.99999974E-6 : f32
    %17 = vector.broadcast %cst_10 : f32 to vector<16x1xf32>
    %18 = arith.addf %16, %17 : vector<16x1xf32>
    %19 = math.rsqrt %18 : vector<16x1xf32>
    %20 = vector.broadcast %19 : vector<16x1xf32> to vector<16x32xf32>
    %21 = arith.mulf %11, %20 : vector<16x32xf32>
    %22 = vector.broadcast %4 : vector<1x32xf32> to vector<16x32xf32>
    %23 = arith.mulf %21, %22 : vector<16x32xf32>
    %24 = vector.broadcast %5 : vector<1x32xf32> to vector<16x32xf32>
    %25 = arith.addf %23, %24 : vector<16x32xf32>
    %26 = arith.truncf %25 : vector<16x32xf32> to vector<16x32xbf16>
    %c0_11 = arith.constant 0 : index
    %c0_12 = arith.constant 0 : index
    %c0_13 = arith.constant 0 : index
    %27 = vector.load %arg4[%c0_11, %c0_12, %c0_13] : memref<2x32x96xbf16, #tpu.memory_space<vmem>>, vector<1x32x96xbf16>
    %28 = vector.shape_cast %27 : vector<1x32x96xbf16> to vector<32x96xbf16>
    %cst_14 = arith.constant dense<0.000000e+00> : vector<16x96xf32>
    %29 = tpu.matmul %26, %28, %cst_14 {dimension_numbers = #tpu.dot_dimension_numbers<[1], [0], [0], [1], [0, 0, 1, 1], [], []>} : vector<16x32xbf16>, vector<32x96xbf16>, vector<16x96xf32> -> vector<16x96xf32>
    %c0_15 = arith.constant 0 : index
    %c0_16 = arith.constant 0 : index
    %c0_17 = arith.constant 0 : index
    %30 = vector.load %arg5[%c0_15, %c0_16, %c0_17] : memref<2x1x96xf32, #tpu.memory_space<vmem>>, vector<1x1x96xf32>
    %31 = vector.shape_cast %30 : vector<1x1x96xf32> to vector<1x96xf32>
    %32 = vector.broadcast %31 : vector<1x96xf32> to vector<16x96xf32>
    %33 = arith.addf %29, %32 : vector<16x96xf32>
    %34 = vector.extract_strided_slice %33 {offsets = [0, 0], sizes = [16, 8], strides = [1, 1]} : vector<16x96xf32> to vector<16x8xf32>
    %35 = vector.shape_cast %34 : vector<16x8xf32> to vector<2x8x8xf32>
    %36 = vector.extract_strided_slice %33 {offsets = [0, 8], sizes = [16, 8], strides = [1, 1]} : vector<16x96xf32> to vector<16x8xf32>
    %37 = vector.shape_cast %36 : vector<16x8xf32> to vector<2x8x8xf32>
    %38 = vector.extract_strided_slice %33 {offsets = [0, 16], sizes = [16, 8], strides = [1, 1]} : vector<16x96xf32> to vector<16x8xf32>
    %39 = vector.shape_cast %38 : vector<16x8xf32> to vector<2x8x8xf32>
    %40 = vector.extract_strided_slice %33 {offsets = [0, 24], sizes = [16, 8], strides = [1, 1]} : vector<16x96xf32> to vector<16x8xf32>
    %41 = vector.shape_cast %40 : vector<16x8xf32> to vector<2x8x8xf32>
    %42 = tpu.concatenate %35, %37, %39, %41 in 0 : vector<2x8x8xf32>, vector<2x8x8xf32>, vector<2x8x8xf32>, vector<2x8x8xf32> -> vector<8x8x8xf32>
    %43 = arith.truncf %42 : vector<8x8x8xf32> to vector<8x8x8xbf16>
    %44 = vector.extract_strided_slice %33 {offsets = [0, 32], sizes = [16, 8], strides = [1, 1]} : vector<16x96xf32> to vector<16x8xf32>
    %45 = vector.shape_cast %44 : vector<16x8xf32> to vector<2x8x8xf32>
    %46 = vector.extract_strided_slice %33 {offsets = [0, 40], sizes = [16, 8], strides = [1, 1]} : vector<16x96xf32> to vector<16x8xf32>
    %47 = vector.shape_cast %46 : vector<16x8xf32> to vector<2x8x8xf32>
    %48 = vector.extract_strided_slice %33 {offsets = [0, 48], sizes = [16, 8], strides = [1, 1]} : vector<16x96xf32> to vector<16x8xf32>
    %49 = vector.shape_cast %48 : vector<16x8xf32> to vector<2x8x8xf32>
    %50 = vector.extract_strided_slice %33 {offsets = [0, 56], sizes = [16, 8], strides = [1, 1]} : vector<16x96xf32> to vector<16x8xf32>
    %51 = vector.shape_cast %50 : vector<16x8xf32> to vector<2x8x8xf32>
    %52 = tpu.concatenate %45, %47, %49, %51 in 0 : vector<2x8x8xf32>, vector<2x8x8xf32>, vector<2x8x8xf32>, vector<2x8x8xf32> -> vector<8x8x8xf32>
    %53 = arith.truncf %52 : vector<8x8x8xf32> to vector<8x8x8xbf16>
    %54 = vector.extract_strided_slice %33 {offsets = [0, 64], sizes = [16, 8], strides = [1, 1]} : vector<16x96xf32> to vector<16x8xf32>
    %55 = vector.shape_cast %54 : vector<16x8xf32> to vector<2x8x8xf32>
    %56 = vector.extract_strided_slice %33 {offsets = [0, 72], sizes = [16, 8], strides = [1, 1]} : vector<16x96xf32> to vector<16x8xf32>
    %57 = vector.shape_cast %56 : vector<16x8xf32> to vector<2x8x8xf32>
    %58 = vector.extract_strided_slice %33 {offsets = [0, 80], sizes = [16, 8], strides = [1, 1]} : vector<16x96xf32> to vector<16x8xf32>
    %59 = vector.shape_cast %58 : vector<16x8xf32> to vector<2x8x8xf32>
    %60 = vector.extract_strided_slice %33 {offsets = [0, 88], sizes = [16, 8], strides = [1, 1]} : vector<16x96xf32> to vector<16x8xf32>
    %61 = vector.shape_cast %60 : vector<16x8xf32> to vector<2x8x8xf32>
    %62 = tpu.concatenate %55, %57, %59, %61 in 0 : vector<2x8x8xf32>, vector<2x8x8xf32>, vector<2x8x8xf32>, vector<2x8x8xf32> -> vector<8x8x8xf32>
    %63 = arith.truncf %62 : vector<8x8x8xf32> to vector<8x8x8xbf16>
    "tpu.trace_start"() <{level = 10 : i32, message = "nqd,nkd->nqk"}> : () -> ()
    %cst_18 = arith.constant dense<0.000000e+00> : vector<8x8x8xf32>
    %64 = tpu.matmul %43, %53, %cst_18 {dimension_numbers = #tpu.dot_dimension_numbers<[2], [2], [1], [1], [0, 0, 0, 1, 1, 1], [0], [0]>} : vector<8x8x8xbf16>, vector<8x8x8xbf16>, vector<8x8x8xf32> -> vector<8x8x8xf32>
    "tpu.trace_stop"() : () -> ()
    %cst_19 = arith.constant 0.353553385 : f32
    %65 = vector.broadcast %cst_19 : f32 to vector<8x8x8xf32>
    %66 = arith.mulf %64, %65 : vector<8x8x8xf32>
    %67 = arith.addf %66, %1 : vector<8x8x8xf32>
    %cst_20 = arith.constant dense<0xFF800000> : vector<8x8xf32>
    %68 = vector.multi_reduction <maximumf>, %67, %cst_20 [2] : vector<8x8x8xf32> to vector<8x8xf32>
    %69 = vector.shape_cast %68 : vector<8x8xf32> to vector<8x8x1xf32>
    %70 = vector.broadcast %69 : vector<8x8x1xf32> to vector<8x8x8xf32>
    %71 = arith.subf %67, %70 : vector<8x8x8xf32>
    %72 = math.exp %71 : vector<8x8x8xf32>
    %cst_21 = arith.constant dense<0.000000e+00> : vector<8x8xf32>
    %73 = vector.multi_reduction <add>, %72, %cst_21 [2] : vector<8x8x8xf32> to vector<8x8xf32>
    %74 = vector.shape_cast %73 : vector<8x8xf32> to vector<8x8x1xf32>
    %75 = tpu.reciprocal %74 {approx = true} : vector<8x8x1xf32> -> vector<8x8x1xf32>
    %76 = vector.broadcast %75 : vector<8x8x1xf32> to vector<8x8x8xf32>
    %77 = arith.mulf %72, %76 : vector<8x8x8xf32>
    %78 = arith.truncf %77 : vector<8x8x8xf32> to vector<8x8x8xbf16>
    "tpu.trace_start"() <{level = 10 : i32, message = "nqk,nkd->nqd"}> : () -> ()
    %cst_22 = arith.constant dense<0.000000e+00> : vector<8x8x8xf32>
    %79 = tpu.matmul %78, %63, %cst_22 {dimension_numbers = #tpu.dot_dimension_numbers<[2], [1], [1], [2], [0, 0, 0, 1, 1, 2], [0], [0]>} : vector<8x8x8xbf16>, vector<8x8x8xbf16>, vector<8x8x8xf32> -> vector<8x8x8xf32>
    "tpu.trace_stop"() : () -> ()
    %80 = vector.extract_strided_slice %79 {offsets = [0, 0, 0], sizes = [2, 8, 8], strides = [1, 1, 1]} : vector<8x8x8xf32> to vector<2x8x8xf32>
    %81 = vector.extract_strided_slice %79 {offsets = [2, 0, 0], sizes = [2, 8, 8], strides = [1, 1, 1]} : vector<8x8x8xf32> to vector<2x8x8xf32>
    %82 = vector.extract_strided_slice %79 {offsets = [4, 0, 0], sizes = [2, 8, 8], strides = [1, 1, 1]} : vector<8x8x8xf32> to vector<2x8x8xf32>
    %83 = vector.extract_strided_slice %79 {offsets = [6, 0, 0], sizes = [2, 8, 8], strides = [1, 1, 1]} : vector<8x8x8xf32> to vector<2x8x8xf32>
    %84 = tpu.concatenate %80, %81, %82, %83 in 2 : vector<2x8x8xf32>, vector<2x8x8xf32>, vector<2x8x8xf32>, vector<2x8x8xf32> -> vector<2x8x32xf32>
    %85 = vector.shape_cast %84 : vector<2x8x32xf32> to vector<16x32xf32>
    %86 = arith.truncf %85 : vector<16x32xf32> to vector<16x32xbf16>
    %c0_23 = arith.constant 0 : index
    %c0_24 = arith.constant 0 : index
    %c0_25 = arith.constant 0 : index
    %87 = vector.load %arg6[%c0_23, %c0_24, %c0_25] : memref<2x32x32xbf16, #tpu.memory_space<vmem>>, vector<1x32x32xbf16>
    %88 = vector.shape_cast %87 : vector<1x32x32xbf16> to vector<32x32xbf16>
    %cst_26 = arith.constant dense<0.000000e+00> : vector<16x32xf32>
    %89 = tpu.matmul %86, %88, %cst_26 {dimension_numbers = #tpu.dot_dimension_numbers<[1], [0], [0], [1], [0, 0, 1, 1], [], []>} : vector<16x32xbf16>, vector<32x32xbf16>, vector<16x32xf32> -> vector<16x32xf32>
    %90 = vector.extract_strided_slice %3 {offsets = [4, 0], sizes = [1, 32], strides = [1, 1]} : vector<6x32xf32> to vector<1x32xf32>
    %91 = vector.broadcast %90 : vector<1x32xf32> to vector<16x32xf32>
    %92 = arith.addf %89, %91 : vector<16x32xf32>
    %93 = arith.addf %0, %92 : vector<16x32xf32>
    %94 = vector.extract_strided_slice %3 {offsets = [2, 0], sizes = [1, 32], strides = [1, 1]} : vector<6x32xf32> to vector<1x32xf32>
    %95 = vector.extract_strided_slice %3 {offsets = [3, 0], sizes = [1, 32], strides = [1, 1]} : vector<6x32xf32> to vector<1x32xf32>
    %cst_27 = arith.constant dense<0.000000e+00> : vector<16xf32>
    %96 = vector.multi_reduction <add>, %93, %cst_27 [1] : vector<16x32xf32> to vector<16xf32>
    %97 = vector.shape_cast %96 : vector<16xf32> to vector<16x1xf32>
    %cst_28 = arith.constant 3.200000e+01 : f32
    %98 = vector.broadcast %cst_28 : f32 to vector<16x1xf32>
    %99 = arith.divf %97, %98 : vector<16x1xf32>
    %100 = vector.broadcast %99 : vector<16x1xf32> to vector<16x32xf32>
    %101 = arith.subf %93, %100 : vector<16x32xf32>
    %102 = arith.mulf %101, %101 : vector<16x32xf32>
    %cst_29 = arith.constant dense<0.000000e+00> : vector<16xf32>
    %103 = vector.multi_reduction <add>, %102, %cst_29 [1] : vector<16x32xf32> to vector<16xf32>
    %104 = vector.shape_cast %103 : vector<16xf32> to vector<16x1xf32>
    %cst_30 = arith.constant 3.200000e+01 : f32
    %105 = vector.broadcast %cst_30 : f32 to vector<16x1xf32>
    %106 = arith.divf %104, %105 : vector<16x1xf32>
    %cst_31 = arith.constant 9.99999974E-6 : f32
    %107 = vector.broadcast %cst_31 : f32 to vector<16x1xf32>
    %108 = arith.addf %106, %107 : vector<16x1xf32>
    %109 = math.rsqrt %108 : vector<16x1xf32>
    %110 = vector.broadcast %109 : vector<16x1xf32> to vector<16x32xf32>
    %111 = arith.mulf %101, %110 : vector<16x32xf32>
    %112 = vector.broadcast %94 : vector<1x32xf32> to vector<16x32xf32>
    %113 = arith.mulf %111, %112 : vector<16x32xf32>
    %114 = vector.broadcast %95 : vector<1x32xf32> to vector<16x32xf32>
    %115 = arith.addf %113, %114 : vector<16x32xf32>
    %116 = arith.truncf %115 : vector<16x32xf32> to vector<16x32xbf16>
    %c0_32 = arith.constant 0 : index
    %c0_33 = arith.constant 0 : index
    %c0_34 = arith.constant 0 : index
    %117 = vector.load %arg7[%c0_32, %c0_33, %c0_34] : memref<2x32x128xbf16, #tpu.memory_space<vmem>>, vector<1x32x128xbf16>
    %118 = vector.shape_cast %117 : vector<1x32x128xbf16> to vector<32x128xbf16>
    %cst_35 = arith.constant dense<0.000000e+00> : vector<16x128xf32>
    %119 = tpu.matmul %116, %118, %cst_35 {dimension_numbers = #tpu.dot_dimension_numbers<[1], [0], [0], [1], [0, 0, 1, 1], [], []>} : vector<16x32xbf16>, vector<32x128xbf16>, vector<16x128xf32> -> vector<16x128xf32>
    %c0_36 = arith.constant 0 : index
    %c0_37 = arith.constant 0 : index
    %c0_38 = arith.constant 0 : index
    %120 = vector.load %arg8[%c0_36, %c0_37, %c0_38] : memref<2x1x128xf32, #tpu.memory_space<vmem>>, vector<1x1x128xf32>
    %121 = vector.shape_cast %120 : vector<1x1x128xf32> to vector<1x128xf32>
    %122 = vector.broadcast %121 : vector<1x128xf32> to vector<16x128xf32>
    %123 = arith.addf %119, %122 : vector<16x128xf32>
    %cst_39 = arith.constant 5.000000e-01 : f32
    %124 = vector.broadcast %cst_39 : f32 to vector<16x128xf32>
    %125 = arith.mulf %124, %123 : vector<16x128xf32>
    %cst_40 = arith.constant 4.471500e-02 : f32
    %126 = vector.broadcast %cst_40 : f32 to vector<16x128xf32>
    %127 = arith.mulf %126, %123 : vector<16x128xf32>
    %128 = arith.mulf %127, %123 : vector<16x128xf32>
    %129 = arith.mulf %128, %123 : vector<16x128xf32>
    %130 = arith.addf %123, %129 : vector<16x128xf32>
    %cst_41 = arith.constant 0.797884583 : f32
    %131 = vector.broadcast %cst_41 : f32 to vector<16x128xf32>
    %132 = arith.mulf %131, %130 : vector<16x128xf32>
    %133 = math.tanh %132 : vector<16x128xf32>
    %cst_42 = arith.constant 1.000000e+00 : f32
    %134 = vector.broadcast %cst_42 : f32 to vector<16x128xf32>
    %135 = arith.addf %134, %133 : vector<16x128xf32>
    %136 = arith.mulf %125, %135 : vector<16x128xf32>
    %137 = arith.truncf %136 : vector<16x128xf32> to vector<16x128xbf16>
    %c0_43 = arith.constant 0 : index
    %c0_44 = arith.constant 0 : index
    %c0_45 = arith.constant 0 : index
    %138 = vector.load %arg9[%c0_43, %c0_44, %c0_45] : memref<2x128x32xbf16, #tpu.memory_space<vmem>>, vector<1x128x32xbf16>
    %139 = vector.shape_cast %138 : vector<1x128x32xbf16> to vector<128x32xbf16>
    %cst_46 = arith.constant dense<0.000000e+00> : vector<16x32xf32>
    %140 = tpu.matmul %137, %139, %cst_46 {dimension_numbers = #tpu.dot_dimension_numbers<[1], [0], [0], [1], [0, 0, 1, 1], [], []>} : vector<16x128xbf16>, vector<128x32xbf16>, vector<16x32xf32> -> vector<16x32xf32>
    %141 = vector.extract_strided_slice %3 {offsets = [5, 0], sizes = [1, 32], strides = [1, 1]} : vector<6x32xf32> to vector<1x32xf32>
    %142 = vector.broadcast %141 : vector<1x32xf32> to vector<16x32xf32>
    %143 = arith.addf %140, %142 : vector<16x32xf32>
    %144 = arith.addf %93, %143 : vector<16x32xf32>
    %c1 = arith.constant 1 : index
    %c0_47 = arith.constant 0 : index
    %c0_48 = arith.constant 0 : index
    %145 = vector.load %arg3[%c1, %c0_47, %c0_48] : memref<2x6x32xf32, #tpu.memory_space<vmem>>, vector<1x6x32xf32>
    %146 = vector.shape_cast %145 : vector<1x6x32xf32> to vector<6x32xf32>
    %147 = vector.extract_strided_slice %146 {offsets = [0, 0], sizes = [1, 32], strides = [1, 1]} : vector<6x32xf32> to vector<1x32xf32>
    %148 = vector.extract_strided_slice %146 {offsets = [1, 0], sizes = [1, 32], strides = [1, 1]} : vector<6x32xf32> to vector<1x32xf32>
    %cst_49 = arith.constant dense<0.000000e+00> : vector<16xf32>
    %149 = vector.multi_reduction <add>, %144, %cst_49 [1] : vector<16x32xf32> to vector<16xf32>
    %150 = vector.shape_cast %149 : vector<16xf32> to vector<16x1xf32>
    %cst_50 = arith.constant 3.200000e+01 : f32
    %151 = vector.broadcast %cst_50 : f32 to vector<16x1xf32>
    %152 = arith.divf %150, %151 : vector<16x1xf32>
    %153 = vector.broadcast %152 : vector<16x1xf32> to vector<16x32xf32>
    %154 = arith.subf %144, %153 : vector<16x32xf32>
    %155 = arith.mulf %154, %154 : vector<16x32xf32>
    %cst_51 = arith.constant dense<0.000000e+00> : vector<16xf32>
    %156 = vector.multi_reduction <add>, %155, %cst_51 [1] : vector<16x32xf32> to vector<16xf32>
    %157 = vector.shape_cast %156 : vector<16xf32> to vector<16x1xf32>
    %cst_52 = arith.constant 3.200000e+01 : f32
    %158 = vector.broadcast %cst_52 : f32 to vector<16x1xf32>
    %159 = arith.divf %157, %158 : vector<16x1xf32>
    %cst_53 = arith.constant 9.99999974E-6 : f32
    %160 = vector.broadcast %cst_53 : f32 to vector<16x1xf32>
    %161 = arith.addf %159, %160 : vector<16x1xf32>
    %162 = math.rsqrt %161 : vector<16x1xf32>
    %163 = vector.broadcast %162 : vector<16x1xf32> to vector<16x32xf32>
    %164 = arith.mulf %154, %163 : vector<16x32xf32>
    %165 = vector.broadcast %147 : vector<1x32xf32> to vector<16x32xf32>
    %166 = arith.mulf %164, %165 : vector<16x32xf32>
    %167 = vector.broadcast %148 : vector<1x32xf32> to vector<16x32xf32>
    %168 = arith.addf %166, %167 : vector<16x32xf32>
    %169 = arith.truncf %168 : vector<16x32xf32> to vector<16x32xbf16>
    %c1_54 = arith.constant 1 : index
    %c0_55 = arith.constant 0 : index
    %c0_56 = arith.constant 0 : index
    %170 = vector.load %arg4[%c1_54, %c0_55, %c0_56] : memref<2x32x96xbf16, #tpu.memory_space<vmem>>, vector<1x32x96xbf16>
    %171 = vector.shape_cast %170 : vector<1x32x96xbf16> to vector<32x96xbf16>
    %cst_57 = arith.constant dense<0.000000e+00> : vector<16x96xf32>
    %172 = tpu.matmul %169, %171, %cst_57 {dimension_numbers = #tpu.dot_dimension_numbers<[1], [0], [0], [1], [0, 0, 1, 1], [], []>} : vector<16x32xbf16>, vector<32x96xbf16>, vector<16x96xf32> -> vector<16x96xf32>
    %c1_58 = arith.constant 1 : index
    %c0_59 = arith.constant 0 : index
    %c0_60 = arith.constant 0 : index
    %173 = vector.load %arg5[%c1_58, %c0_59, %c0_60] : memref<2x1x96xf32, #tpu.memory_space<vmem>>, vector<1x1x96xf32>
    %174 = vector.shape_cast %173 : vector<1x1x96xf32> to vector<1x96xf32>
    %175 = vector.broadcast %174 : vector<1x96xf32> to vector<16x96xf32>
    %176 = arith.addf %172, %175 : vector<16x96xf32>
    %177 = vector.extract_strided_slice %176 {offsets = [0, 0], sizes = [16, 8], strides = [1, 1]} : vector<16x96xf32> to vector<16x8xf32>
    %178 = vector.shape_cast %177 : vector<16x8xf32> to vector<2x8x8xf32>
    %179 = vector.extract_strided_slice %176 {offsets = [0, 8], sizes = [16, 8], strides = [1, 1]} : vector<16x96xf32> to vector<16x8xf32>
    %180 = vector.shape_cast %179 : vector<16x8xf32> to vector<2x8x8xf32>
    %181 = vector.extract_strided_slice %176 {offsets = [0, 16], sizes = [16, 8], strides = [1, 1]} : vector<16x96xf32> to vector<16x8xf32>
    %182 = vector.shape_cast %181 : vector<16x8xf32> to vector<2x8x8xf32>
    %183 = vector.extract_strided_slice %176 {offsets = [0, 24], sizes = [16, 8], strides = [1, 1]} : vector<16x96xf32> to vector<16x8xf32>
    %184 = vector.shape_cast %183 : vector<16x8xf32> to vector<2x8x8xf32>
    %185 = tpu.concatenate %178, %180, %182, %184 in 0 : vector<2x8x8xf32>, vector<2x8x8xf32>, vector<2x8x8xf32>, vector<2x8x8xf32> -> vector<8x8x8xf32>
    %186 = arith.truncf %185 : vector<8x8x8xf32> to vector<8x8x8xbf16>
    %187 = vector.extract_strided_slice %176 {offsets = [0, 32], sizes = [16, 8], strides = [1, 1]} : vector<16x96xf32> to vector<16x8xf32>
    %188 = vector.shape_cast %187 : vector<16x8xf32> to vector<2x8x8xf32>
    %189 = vector.extract_strided_slice %176 {offsets = [0, 40], sizes = [16, 8], strides = [1, 1]} : vector<16x96xf32> to vector<16x8xf32>
    %190 = vector.shape_cast %189 : vector<16x8xf32> to vector<2x8x8xf32>
    %191 = vector.extract_strided_slice %176 {offsets = [0, 48], sizes = [16, 8], strides = [1, 1]} : vector<16x96xf32> to vector<16x8xf32>
    %192 = vector.shape_cast %191 : vector<16x8xf32> to vector<2x8x8xf32>
    %193 = vector.extract_strided_slice %176 {offsets = [0, 56], sizes = [16, 8], strides = [1, 1]} : vector<16x96xf32> to vector<16x8xf32>
    %194 = vector.shape_cast %193 : vector<16x8xf32> to vector<2x8x8xf32>
    %195 = tpu.concatenate %188, %190, %192, %194 in 0 : vector<2x8x8xf32>, vector<2x8x8xf32>, vector<2x8x8xf32>, vector<2x8x8xf32> -> vector<8x8x8xf32>
    %196 = arith.truncf %195 : vector<8x8x8xf32> to vector<8x8x8xbf16>
    %197 = vector.extract_strided_slice %176 {offsets = [0, 64], sizes = [16, 8], strides = [1, 1]} : vector<16x96xf32> to vector<16x8xf32>
    %198 = vector.shape_cast %197 : vector<16x8xf32> to vector<2x8x8xf32>
    %199 = vector.extract_strided_slice %176 {offsets = [0, 72], sizes = [16, 8], strides = [1, 1]} : vector<16x96xf32> to vector<16x8xf32>
    %200 = vector.shape_cast %199 : vector<16x8xf32> to vector<2x8x8xf32>
    %201 = vector.extract_strided_slice %176 {offsets = [0, 80], sizes = [16, 8], strides = [1, 1]} : vector<16x96xf32> to vector<16x8xf32>
    %202 = vector.shape_cast %201 : vector<16x8xf32> to vector<2x8x8xf32>
    %203 = vector.extract_strided_slice %176 {offsets = [0, 88], sizes = [16, 8], strides = [1, 1]} : vector<16x96xf32> to vector<16x8xf32>
    %204 = vector.shape_cast %203 : vector<16x8xf32> to vector<2x8x8xf32>
    %205 = tpu.concatenate %198, %200, %202, %204 in 0 : vector<2x8x8xf32>, vector<2x8x8xf32>, vector<2x8x8xf32>, vector<2x8x8xf32> -> vector<8x8x8xf32>
    %206 = arith.truncf %205 : vector<8x8x8xf32> to vector<8x8x8xbf16>
    "tpu.trace_start"() <{level = 10 : i32, message = "nqd,nkd->nqk"}> : () -> ()
    %cst_61 = arith.constant dense<0.000000e+00> : vector<8x8x8xf32>
    %207 = tpu.matmul %186, %196, %cst_61 {dimension_numbers = #tpu.dot_dimension_numbers<[2], [2], [1], [1], [0, 0, 0, 1, 1, 1], [0], [0]>} : vector<8x8x8xbf16>, vector<8x8x8xbf16>, vector<8x8x8xf32> -> vector<8x8x8xf32>
    "tpu.trace_stop"() : () -> ()
    %cst_62 = arith.constant 0.353553385 : f32
    %208 = vector.broadcast %cst_62 : f32 to vector<8x8x8xf32>
    %209 = arith.mulf %207, %208 : vector<8x8x8xf32>
    %210 = arith.addf %209, %1 : vector<8x8x8xf32>
    %cst_63 = arith.constant dense<0xFF800000> : vector<8x8xf32>
    %211 = vector.multi_reduction <maximumf>, %210, %cst_63 [2] : vector<8x8x8xf32> to vector<8x8xf32>
    %212 = vector.shape_cast %211 : vector<8x8xf32> to vector<8x8x1xf32>
    %213 = vector.broadcast %212 : vector<8x8x1xf32> to vector<8x8x8xf32>
    %214 = arith.subf %210, %213 : vector<8x8x8xf32>
    %215 = math.exp %214 : vector<8x8x8xf32>
    %cst_64 = arith.constant dense<0.000000e+00> : vector<8x8xf32>
    %216 = vector.multi_reduction <add>, %215, %cst_64 [2] : vector<8x8x8xf32> to vector<8x8xf32>
    %217 = vector.shape_cast %216 : vector<8x8xf32> to vector<8x8x1xf32>
    %218 = tpu.reciprocal %217 {approx = true} : vector<8x8x1xf32> -> vector<8x8x1xf32>
    %219 = vector.broadcast %218 : vector<8x8x1xf32> to vector<8x8x8xf32>
    %220 = arith.mulf %215, %219 : vector<8x8x8xf32>
    %221 = arith.truncf %220 : vector<8x8x8xf32> to vector<8x8x8xbf16>
    "tpu.trace_start"() <{level = 10 : i32, message = "nqk,nkd->nqd"}> : () -> ()
    %cst_65 = arith.constant dense<0.000000e+00> : vector<8x8x8xf32>
    %222 = tpu.matmul %221, %206, %cst_65 {dimension_numbers = #tpu.dot_dimension_numbers<[2], [1], [1], [2], [0, 0, 0, 1, 1, 2], [0], [0]>} : vector<8x8x8xbf16>, vector<8x8x8xbf16>, vector<8x8x8xf32> -> vector<8x8x8xf32>
    "tpu.trace_stop"() : () -> ()
    %223 = vector.extract_strided_slice %222 {offsets = [0, 0, 0], sizes = [2, 8, 8], strides = [1, 1, 1]} : vector<8x8x8xf32> to vector<2x8x8xf32>
    %224 = vector.extract_strided_slice %222 {offsets = [2, 0, 0], sizes = [2, 8, 8], strides = [1, 1, 1]} : vector<8x8x8xf32> to vector<2x8x8xf32>
    %225 = vector.extract_strided_slice %222 {offsets = [4, 0, 0], sizes = [2, 8, 8], strides = [1, 1, 1]} : vector<8x8x8xf32> to vector<2x8x8xf32>
    %226 = vector.extract_strided_slice %222 {offsets = [6, 0, 0], sizes = [2, 8, 8], strides = [1, 1, 1]} : vector<8x8x8xf32> to vector<2x8x8xf32>
    %227 = tpu.concatenate %223, %224, %225, %226 in 2 : vector<2x8x8xf32>, vector<2x8x8xf32>, vector<2x8x8xf32>, vector<2x8x8xf32> -> vector<2x8x32xf32>
    %228 = vector.shape_cast %227 : vector<2x8x32xf32> to vector<16x32xf32>
    %229 = arith.truncf %228 : vector<16x32xf32> to vector<16x32xbf16>
    %c1_66 = arith.constant 1 : index
    %c0_67 = arith.constant 0 : index
    %c0_68 = arith.constant 0 : index
    %230 = vector.load %arg6[%c1_66, %c0_67, %c0_68] : memref<2x32x32xbf16, #tpu.memory_space<vmem>>, vector<1x32x32xbf16>
    %231 = vector.shape_cast %230 : vector<1x32x32xbf16> to vector<32x32xbf16>
    %cst_69 = arith.constant dense<0.000000e+00> : vector<16x32xf32>
    %232 = tpu.matmul %229, %231, %cst_69 {dimension_numbers = #tpu.dot_dimension_numbers<[1], [0], [0], [1], [0, 0, 1, 1], [], []>} : vector<16x32xbf16>, vector<32x32xbf16>, vector<16x32xf32> -> vector<16x32xf32>
    %233 = vector.extract_strided_slice %146 {offsets = [4, 0], sizes = [1, 32], strides = [1, 1]} : vector<6x32xf32> to vector<1x32xf32>
    %234 = vector.broadcast %233 : vector<1x32xf32> to vector<16x32xf32>
    %235 = arith.addf %232, %234 : vector<16x32xf32>
    %236 = arith.addf %144, %235 : vector<16x32xf32>
    %237 = vector.extract_strided_slice %146 {offsets = [2, 0], sizes = [1, 32], strides = [1, 1]} : vector<6x32xf32> to vector<1x32xf32>
    %238 = vector.extract_strided_slice %146 {offsets = [3, 0], sizes = [1, 32], strides = [1, 1]} : vector<6x32xf32> to vector<1x32xf32>
    %cst_70 = arith.constant dense<0.000000e+00> : vector<16xf32>
    %239 = vector.multi_reduction <add>, %236, %cst_70 [1] : vector<16x32xf32> to vector<16xf32>
    %240 = vector.shape_cast %239 : vector<16xf32> to vector<16x1xf32>
    %cst_71 = arith.constant 3.200000e+01 : f32
    %241 = vector.broadcast %cst_71 : f32 to vector<16x1xf32>
    %242 = arith.divf %240, %241 : vector<16x1xf32>
    %243 = vector.broadcast %242 : vector<16x1xf32> to vector<16x32xf32>
    %244 = arith.subf %236, %243 : vector<16x32xf32>
    %245 = arith.mulf %244, %244 : vector<16x32xf32>
    %cst_72 = arith.constant dense<0.000000e+00> : vector<16xf32>
    %246 = vector.multi_reduction <add>, %245, %cst_72 [1] : vector<16x32xf32> to vector<16xf32>
    %247 = vector.shape_cast %246 : vector<16xf32> to vector<16x1xf32>
    %cst_73 = arith.constant 3.200000e+01 : f32
    %248 = vector.broadcast %cst_73 : f32 to vector<16x1xf32>
    %249 = arith.divf %247, %248 : vector<16x1xf32>
    %cst_74 = arith.constant 9.99999974E-6 : f32
    %250 = vector.broadcast %cst_74 : f32 to vector<16x1xf32>
    %251 = arith.addf %249, %250 : vector<16x1xf32>
    %252 = math.rsqrt %251 : vector<16x1xf32>
    %253 = vector.broadcast %252 : vector<16x1xf32> to vector<16x32xf32>
    %254 = arith.mulf %244, %253 : vector<16x32xf32>
    %255 = vector.broadcast %237 : vector<1x32xf32> to vector<16x32xf32>
    %256 = arith.mulf %254, %255 : vector<16x32xf32>
    %257 = vector.broadcast %238 : vector<1x32xf32> to vector<16x32xf32>
    %258 = arith.addf %256, %257 : vector<16x32xf32>
    %259 = arith.truncf %258 : vector<16x32xf32> to vector<16x32xbf16>
    %c1_75 = arith.constant 1 : index
    %c0_76 = arith.constant 0 : index
    %c0_77 = arith.constant 0 : index
    %260 = vector.load %arg7[%c1_75, %c0_76, %c0_77] : memref<2x32x128xbf16, #tpu.memory_space<vmem>>, vector<1x32x128xbf16>
    %261 = vector.shape_cast %260 : vector<1x32x128xbf16> to vector<32x128xbf16>
    %cst_78 = arith.constant dense<0.000000e+00> : vector<16x128xf32>
    %262 = tpu.matmul %259, %261, %cst_78 {dimension_numbers = #tpu.dot_dimension_numbers<[1], [0], [0], [1], [0, 0, 1, 1], [], []>} : vector<16x32xbf16>, vector<32x128xbf16>, vector<16x128xf32> -> vector<16x128xf32>
    %c1_79 = arith.constant 1 : index
    %c0_80 = arith.constant 0 : index
    %c0_81 = arith.constant 0 : index
    %263 = vector.load %arg8[%c1_79, %c0_80, %c0_81] : memref<2x1x128xf32, #tpu.memory_space<vmem>>, vector<1x1x128xf32>
    %264 = vector.shape_cast %263 : vector<1x1x128xf32> to vector<1x128xf32>
    %265 = vector.broadcast %264 : vector<1x128xf32> to vector<16x128xf32>
    %266 = arith.addf %262, %265 : vector<16x128xf32>
    %cst_82 = arith.constant 5.000000e-01 : f32
    %267 = vector.broadcast %cst_82 : f32 to vector<16x128xf32>
    %268 = arith.mulf %267, %266 : vector<16x128xf32>
    %cst_83 = arith.constant 4.471500e-02 : f32
    %269 = vector.broadcast %cst_83 : f32 to vector<16x128xf32>
    %270 = arith.mulf %269, %266 : vector<16x128xf32>
    %271 = arith.mulf %270, %266 : vector<16x128xf32>
    %272 = arith.mulf %271, %266 : vector<16x128xf32>
    %273 = arith.addf %266, %272 : vector<16x128xf32>
    %cst_84 = arith.constant 0.797884583 : f32
    %274 = vector.broadcast %cst_84 : f32 to vector<16x128xf32>
    %275 = arith.mulf %274, %273 : vector<16x128xf32>
    %276 = math.tanh %275 : vector<16x128xf32>
    %cst_85 = arith.constant 1.000000e+00 : f32
    %277 = vector.broadcast %cst_85 : f32 to vector<16x128xf32>
    %278 = arith.addf %277, %276 : vector<16x128xf32>
    %279 = arith.mulf %268, %278 : vector<16x128xf32>
    %280 = arith.truncf %279 : vector<16x128xf32> to vector<16x128xbf16>
    %c1_86 = arith.constant 1 : index
    %c0_87 = arith.constant 0 : index
    %c0_88 = arith.constant 0 : index
    %281 = vector.load %arg9[%c1_86, %c0_87, %c0_88] : memref<2x128x32xbf16, #tpu.memory_space<vmem>>, vector<1x128x32xbf16>
    %282 = vector.shape_cast %281 : vector<1x128x32xbf16> to vector<128x32xbf16>
    %cst_89 = arith.constant dense<0.000000e+00> : vector<16x32xf32>
    %283 = tpu.matmul %280, %282, %cst_89 {dimension_numbers = #tpu.dot_dimension_numbers<[1], [0], [0], [1], [0, 0, 1, 1], [], []>} : vector<16x128xbf16>, vector<128x32xbf16>, vector<16x32xf32> -> vector<16x32xf32>
    %284 = vector.extract_strided_slice %146 {offsets = [5, 0], sizes = [1, 32], strides = [1, 1]} : vector<6x32xf32> to vector<1x32xf32>
    %285 = vector.broadcast %284 : vector<1x32xf32> to vector<16x32xf32>
    %286 = arith.addf %283, %285 : vector<16x32xf32>
    %287 = arith.addf %236, %286 : vector<16x32xf32>
    %c0_90 = arith.constant 0 : index
    %c0_91 = arith.constant 0 : index
    %288 = vector.load %arg2[%c0_90, %c0_91] : memref<2x16xf32, #tpu.memory_space<vmem>>, vector<2x16xf32>
    %cst_92 = arith.constant dense<0.000000e+00> : vector<2x32xf32>
    %289 = tpu.matmul %288, %287, %cst_92 {dimension_numbers = #tpu.dot_dimension_numbers<[1], [0], [0], [1], [0, 0, 1, 1], [], []>} : vector<2x16xf32>, vector<16x32xf32>, vector<2x32xf32> -> vector<2x32xf32>
    %c0_93 = arith.constant 0 : index
    %c0_94 = arith.constant 0 : index
    %290 = vector.load %arg10[%c0_93, %c0_94] : memref<2x32xf32, #tpu.memory_space<vmem>>, vector<1x32xf32>
    %c1_95 = arith.constant 1 : index
    %c0_96 = arith.constant 0 : index
    %291 = vector.load %arg10[%c1_95, %c0_96] : memref<2x32xf32, #tpu.memory_space<vmem>>, vector<1x32xf32>
    %cst_97 = arith.constant dense<0.000000e+00> : vector<2xf32>
    %292 = vector.multi_reduction <add>, %289, %cst_97 [1] : vector<2x32xf32> to vector<2xf32>
    %293 = vector.shape_cast %292 : vector<2xf32> to vector<2x1xf32>
    %cst_98 = arith.constant 3.200000e+01 : f32
    %294 = vector.broadcast %cst_98 : f32 to vector<2x1xf32>
    %295 = arith.divf %293, %294 : vector<2x1xf32>
    %296 = vector.broadcast %295 : vector<2x1xf32> to vector<2x32xf32>
    %297 = arith.subf %289, %296 : vector<2x32xf32>
    %298 = arith.mulf %297, %297 : vector<2x32xf32>
    %cst_99 = arith.constant dense<0.000000e+00> : vector<2xf32>
    %299 = vector.multi_reduction <add>, %298, %cst_99 [1] : vector<2x32xf32> to vector<2xf32>
    %300 = vector.shape_cast %299 : vector<2xf32> to vector<2x1xf32>
    %cst_100 = arith.constant 3.200000e+01 : f32
    %301 = vector.broadcast %cst_100 : f32 to vector<2x1xf32>
    %302 = arith.divf %300, %301 : vector<2x1xf32>
    %cst_101 = arith.constant 9.99999974E-6 : f32
    %303 = vector.broadcast %cst_101 : f32 to vector<2x1xf32>
    %304 = arith.addf %302, %303 : vector<2x1xf32>
    %305 = math.rsqrt %304 : vector<2x1xf32>
    %306 = vector.broadcast %305 : vector<2x1xf32> to vector<2x32xf32>
    %307 = arith.mulf %297, %306 : vector<2x32xf32>
    %308 = vector.broadcast %290 : vector<1x32xf32> to vector<2x32xf32>
    %309 = arith.mulf %307, %308 : vector<2x32xf32>
    %310 = vector.broadcast %291 : vector<1x32xf32> to vector<2x32xf32>
    %311 = arith.addf %309, %310 : vector<2x32xf32>
    %312 = arith.truncf %311 : vector<2x32xf32> to vector<2x32xbf16>
    %c0_102 = arith.constant 0 : index
    %c0_103 = arith.constant 0 : index
    %313 = vector.load %arg11[%c0_102, %c0_103] : memref<32x128xbf16, #tpu.memory_space<vmem>>, vector<32x128xbf16>
    %cst_104 = arith.constant dense<0.000000e+00> : vector<2x128xf32>
    %314 = tpu.matmul %312, %313, %cst_104 {dimension_numbers = #tpu.dot_dimension_numbers<[1], [0], [0], [1], [0, 0, 1, 1], [], []>} : vector<2x32xbf16>, vector<32x128xbf16>, vector<2x128xf32> -> vector<2x128xf32>
    %c0_105 = arith.constant 0 : index
    %c0_106 = arith.constant 0 : index
    %315 = vector.load %arg12[%c0_105, %c0_106] : memref<2x128xf32, #tpu.memory_space<vmem>>, vector<2x128xf32>
    tpu.vector_store %arg12[%c0_105, %c0_106], %314 {strides = array<i32>} : memref<2x128xf32, #tpu.memory_space<vmem>>, vector<2x128xf32>,
    return
  }
}

</mosaic_0001>

<llo_original>
// kernel: _lambda_.1
$region0: #{_lambda_.1}
  #allocation0 [shape = 'u32[]', space=smem, size = 0x4, offset = 0x4, fixed_abs, tag = 'smem constant byte address 0x4 - core index']
  #allocation1 [shape = 'u32[72,128]{1,0:T(1,128)}', space=vmem, size = 0x9000, scoped, tag = 'internal scratch']
  %s0 = inlined_call_operand.vmem [shape: f32[16,32], index: 0, kind: input, shape index: {}]
  %s1 = inlined_call_operand.vmem [shape: f32[8,8,8], index: 1, kind: input, shape index: {}]
  %s2 = inlined_call_operand.vmem [shape: f32[2,16], index: 2, kind: input, shape index: {}]
  %s3 = inlined_call_operand.vmem [shape: f32[2,6,32], index: 3, kind: input, shape index: {}]
  %s4 = inlined_call_operand.vmem [shape: bf16[2,32,96], index: 4, kind: input, shape index: {}]
  %s5 = inlined_call_operand.vmem [shape: f32[2,1,96], index: 5, kind: input, shape index: {}]
  %s6 = inlined_call_operand.vmem [shape: bf16[2,32,32], index: 6, kind: input, shape index: {}]
  %s7 = inlined_call_operand.vmem [shape: bf16[2,32,128], index: 7, kind: input, shape index: {}]
  %s8 = inlined_call_operand.vmem [shape: f32[2,1,128], index: 8, kind: input, shape index: {}]
  %s9 = inlined_call_operand.vmem [shape: bf16[2,128,32], index: 9, kind: input, shape index: {}]
  %s10 = inlined_call_operand.vmem [shape: f32[2,32], index: 10, kind: input, shape index: {}]
  %s11 = inlined_call_operand.vmem [shape: bf16[32,128], index: 11, kind: input, shape index: {}]
  %s12 = inlined_call_operand.hbm [shape: f32[2,128], index: 12, kind: output, shape index: {}]
  %s13 = sld [smem:[#allocation0]]
  $region58: #{_lambda_.1} parent=0
    _
  %s15 = ssub.s32 1, %s13
  %s16 = scalar_select 0, %s15, %s13
  $region1: #{_lambda_.1} parent=0
    #allocation2 [shape = 'u8[1024]{0}', space=vmem, size = 0x400, scoped, tag = 'output window, operand 0, single buffered']
    #allocation3 [shape = 's32[1]{0}', space=sflag, size = 0x4, scoped, tag = 'scoped memory for _lambda_.1']
    %17 = vsyncpa [#allocation3], 0
    // Predicated region
    $region2: #{_lambda_.1} parent=1 // pred_check
      _
    $region3: #{_lambda_.1} parent=1 // pred_check_branch
      %19 = sbr.rel (0) target = $region5
    $region4: #{_lambda_.1} parent=1 // pred_region
      _
    $region5: #{_lambda_.1} parent=1 // pred_fallthru
      _
    // Predicated region
    $region6: #{_lambda_.1} parent=1 // pred_check
      _
    $region7: #{_lambda_.1} parent=1 // pred_check_branch
      %21 = sbr.rel (0) target = $region9
    $region8: #{_lambda_.1} parent=1 // pred_region
      _
    $region9: #{_lambda_.1} parent=1 // pred_fallthru
      _
    // Predicated region
    $region10: #{_lambda_.1} parent=1 // pred_check
      _
    $region11: #{_lambda_.1} parent=1 // pred_check_branch
      %23 = sbr.rel (0) target = $region13
    $region12: #{_lambda_.1} parent=1 // pred_region
      _
    $region13: #{_lambda_.1} parent=1 // pred_fallthru
      _
    // Predicated region
    $region14: #{_lambda_.1} parent=1 // pred_check
      _
    $region15: #{_lambda_.1} parent=1 // pred_check_branch
      %25 = sbr.rel (0) target = $region17
    $region16: #{_lambda_.1} parent=1 // pred_region
      _
    $region17: #{_lambda_.1} parent=1 // pred_fallthru
      _
    // Predicated region
    $region18: #{_lambda_.1} parent=1 // pred_check
      _
    $region19: #{_lambda_.1} parent=1 // pred_check_branch
      %27 = sbr.rel (0) target = $region21
    $region20: #{_lambda_.1} parent=1 // pred_region
      _
    $region21: #{_lambda_.1} parent=1 // pred_fallthru
      _
    // Predicated region
    $region22: #{_lambda_.1} parent=1 // pred_check
      _
    $region23: #{_lambda_.1} parent=1 // pred_check_branch
      %29 = sbr.rel (0) target = $region25
    $region24: #{_lambda_.1} parent=1 // pred_region
      _
    $region25: #{_lambda_.1} parent=1 // pred_fallthru
      _
    // Predicated region
    $region26: #{_lambda_.1} parent=1 // pred_check
      _
    $region27: #{_lambda_.1} parent=1 // pred_check_branch
      %31 = sbr.rel (0) target = $region29
    $region28: #{_lambda_.1} parent=1 // pred_region
      _
    $region29: #{_lambda_.1} parent=1 // pred_fallthru
      _
    // Predicated region
    $region30: #{_lambda_.1} parent=1 // pred_check
      _
    $region31: #{_lambda_.1} parent=1 // pred_check_branch
      %33 = sbr.rel (0) target = $region33
    $region32: #{_lambda_.1} parent=1 // pred_region
      _
    $region33: #{_lambda_.1} parent=1 // pred_fallthru
      _
    // Predicated region
    $region34: #{_lambda_.1} parent=1 // pred_check
      _
    $region35: #{_lambda_.1} parent=1 // pred_check_branch
      %35 = sbr.rel (0) target = $region37
    $region36: #{_lambda_.1} parent=1 // pred_region
      _
    $region37: #{_lambda_.1} parent=1 // pred_fallthru
      _
    // Predicated region
    $region38: #{_lambda_.1} parent=1 // pred_check
      _
    $region39: #{_lambda_.1} parent=1 // pred_check_branch
      %37 = sbr.rel (0) target = $region41
    $region40: #{_lambda_.1} parent=1 // pred_region
      _
    $region41: #{_lambda_.1} parent=1 // pred_fallthru
      _
    // Predicated region
    $region42: #{_lambda_.1} parent=1 // pred_check
      _
    $region43: #{_lambda_.1} parent=1 // pred_check_branch
      %39 = sbr.rel (0) target = $region45
    $region44: #{_lambda_.1} parent=1 // pred_region
      _
    $region45: #{_lambda_.1} parent=1 // pred_fallthru
      _
    // Predicated region
    $region46: #{_lambda_.1} parent=1 // pred_check
      _
    $region47: #{_lambda_.1} parent=1 // pred_check_branch
      %41 = sbr.rel (0) target = $region49
    $region48: #{_lambda_.1} parent=1 // pred_region
      _
    $region49: #{_lambda_.1} parent=1 // pred_fallthru
      _
    %v43 = vld [vmem:[%s0] sm:$0xff]
    %v44 = vld [vmem:[%s0 + $0x8] sm:$0xff]
    %v45 = vld [vmem:[%s1] sm:$0xff]
    %v46 = vld [vmem:[%s1 + $0x8] sm:$0xff]
    %v47 = vld [vmem:[%s1 + $0x10] sm:$0xff]
    %v48 = vld [vmem:[%s1 + $0x18] sm:$0xff]
    %v49 = vld [vmem:[%s1 + $0x20] sm:$0xff]
    %v50 = vld [vmem:[%s1 + $0x28] sm:$0xff]
    %v51 = vld [vmem:[%s1 + $0x30] sm:$0xff]
    %v52 = vld [vmem:[%s1 + $0x38] sm:$0xff]
    %v53 = vld [vmem:[%s3] sm:$0x3f]
    %vm54 = vcmask 261120
    %v55 = vsel %vm54, %v43, 0.0
    %56 = vadd.xlane.f32.xlu0 %v55
    %v57 = vpop.xlane.xlu0 %56
    %v58 = vsel %vm54, %v44, 0.0
    %59 = vadd.xlane.f32.xlu0 %v58
    %v60 = vpop.xlane.xlu0 %59
    %v61 = vrcp.pop 32.0
    %v62 = vmul.f32 32.0, %v61
    %v63 = vsub.f32 1.0, %v62
    %v64 = vmul.f32 %v61, %v63
    %v65 = vadd.f32 %v61, %v64
    %vm66 = vweird.f32 %v61
    %v67 = vsel %vm66, %v61, %v65
    %v68 = vmul.f32 %v57, %v67
    %v69 = vmul.f32 %v60, %v67
    %v70 = vsub.f32 %v43, %v68
    %v71 = vsub.f32 %v44, %v69
    %v72 = vmul.f32 %v70, %v70
    %v73 = vmul.f32 %v71, %v71
    %v74 = vsel %vm54, %v72, 0.0
    %75 = vadd.xlane.f32.xlu0 %v74
    %v76 = vpop.xlane.xlu0 %75
    %v77 = vsel %vm54, %v73, 0.0
    %78 = vadd.xlane.f32.xlu0 %v77
    %v79 = vpop.xlane.xlu0 %78
    %v80 = vmul.f32 %v76, %v67
    %v81 = vmul.f32 %v79, %v67
    %v82 = vadd.f32 %v80, 1e-05
    %v83 = vadd.f32 %v81, 1e-05
    %v84 = vrsqrt.pop %v82
    %v85 = vmul.f32 %v84, %v82
    %v86 = vmul.f32 %v85, %v84
    %v87 = vmul.f32 0.5, %v86
    %v88 = vsub.f32 1.5, %v87
    %v89 = vmul.f32 %v84, %v88
    %vm90 = vweird.f32 %v82
    %vm91 = vweird.f32 %v84
    %vm92 = vmor %vm90, %vm91
    %v93 = vsel %vm92, %v84, %v89
    %v94 = vrsqrt.pop %v83
    %v95 = vmul.f32 %v94, %v83
    %v96 = vmul.f32 %v95, %v94
    %v97 = vmul.f32 0.5, %v96
    %v98 = vsub.f32 1.5, %v97
    %v99 = vmul.f32 %v94, %v98
    %vm100 = vweird.f32 %v83
    %vm101 = vweird.f32 %v94
    %vm102 = vmor %vm100, %vm101
    %v103 = vsel %vm102, %v94, %v99
    %v104 = vmul.f32 %v70, %v93
    %v105 = vmul.f32 %v71, %v103
    %v106 = vperm.slane %v53, 0
    %v107 = vmul.f32 %v104, %v106
    %v108 = vmul.f32 %v105, %v106
    %v109 = vperm.slane %v53, 1
    %v110 = vadd.f32 %v107, %v109
    %v111 = vadd.f32 %v108, %v109
    %v112 = vpack.c.bf16 %v111, %v110
    %v113 = vld [vmem:[%s4] sm:$0xf]
    %v114 = vld [vmem:[%s4 + $0x4] sm:$0xf]
    %v115 = vld [vmem:[%s4 + $0x8] sm:$0xf]
    %v116 = vld [vmem:[%s4 + $0xc] sm:$0xf]
    %v117 = vld [vmem:[%s5] sm:$0x1]
    %v119 = vperm.slane %v117, 0
    %v125 = vunpack.c.l.b16 %v113
    %v126 = vunpack.c.l.b16 %v114
    %v127 = vunpack.c.l.b16 %v115
    %v128 = vunpack.c.l.b16 %v116
    %v129 = vpack.c.b16 %v126, %v125
    %v130 = vpack.c.b16 %v128, %v127
    %v134 = vsel %vm54, %v112, 0
    %136 = vmatpush.bf16.msra.mxu0 0
    %137 = vmatpush.bf16.msra.mxu0 0
    %138 = vmatpush.bf16.msra.mxu0 0
    %139 = vmatpush.bf16.msra.mxu0 0
    %140 = vmatpush.bf16.msra.mxu0 0
    %141 = vmatpush.bf16.msra.mxu0 0
    %142 = vmatpush.bf16.msra.mxu0 %v130
    %143 = vmatpush.bf16.msra.mxu0 %v129
    %144 = vmatmul.bf16.gmra.mxu0 %v134
    %v145 = vpop.f32.mrf.mxu0
    %v146 = vadd.f32 %v119, %v145
    %v147 = vpop.f32.mrf.mxu0
    %v148 = vadd.f32 %v119, %v147
    %149 = vdwg.mxu0
    %152 = vrot.lane.b32.xlu0 %v146, 120
    %v153 = vpop.permute.xlu0 %152
    %154 = vrot.lane.b32.xlu0 %v148, 120
    %v155 = vpop.permute.xlu0 %154
    %158 = vrot.lane.b32.xlu0 %v146, 112
    %v159 = vpop.permute.xlu0 %158
    %160 = vrot.lane.b32.xlu0 %v148, 112
    %v161 = vpop.permute.xlu0 %160
    %164 = vrot.lane.b32.xlu0 %v146, 104
    %v165 = vpop.permute.xlu0 %164
    %166 = vrot.lane.b32.xlu0 %v148, 104
    %v167 = vpop.permute.xlu0 %166
    %v170 = vpack.c.bf16 %v146, %v146
    %v171 = vpack.c.bf16 %v148, %v148
    %v172 = vpack.c.bf16 %v153, %v153
    %v173 = vpack.c.bf16 %v155, %v155
    %v174 = vpack.c.bf16 %v159, %v159
    %v175 = vpack.c.bf16 %v161, %v161
    %v176 = vpack.c.bf16 %v165, %v165
    %v177 = vpack.c.bf16 %v167, %v167
    %v179 = vunpack.c.l.b16 %v170
    %v180 = vpack.c.b16 %v179, %v179
    %181 = vrot.lane.b32.xlu0 %v180, 96
    %v182 = vpop.permute.xlu0 %181
    %vm183 = vcmask 64512
    %v185 = vsel %vm183, %v170, 0
    %v188 = vsel %vm183, %v182, 0
    %190 = vmatpush.bf16.xpose.msra.mxu0 0
    %191 = vmatpush.bf16.xpose.msra.mxu0 0
    %192 = vmatpush.bf16.xpose.msra.mxu0 0
    %193 = vmatpush.bf16.xpose.msra.mxu0 0
    %194 = vmatpush.bf16.xpose.msra.mxu0 0
    %195 = vmatpush.bf16.xpose.msra.mxu0 0
    %196 = vmatpush.bf16.xpose.msra.mxu0 0
    %197 = vmatpush.bf16.xpose.msra.mxu0 %v188
    %198 = vmatmul.bf16.gmra.mxu0 %v185
    %v199 = vpop.f32.mrf.mxu0
    %v200 = vadd.f32 0.0, %v199
    %v201 = vpop.f32.mrf.mxu0
    %202 = vdwg.mxu0
    %v204 = vunpack.c.l.b16 %v171
    %v205 = vpack.c.b16 %v204, %v204
    %206 = vrot.lane.b32.xlu0 %v205, 96
    %v207 = vpop.permute.xlu0 %206
    %v209 = vsel %vm183, %v171, 0
    %v212 = vsel %vm183, %v207, 0
    %214 = vmatpush.bf16.xpose.msra.mxu0 0
    %215 = vmatpush.bf16.xpose.msra.mxu0 0
    %216 = vmatpush.bf16.xpose.msra.mxu0 0
    %217 = vmatpush.bf16.xpose.msra.mxu0 0
    %218 = vmatpush.bf16.xpose.msra.mxu0 0
    %219 = vmatpush.bf16.xpose.msra.mxu0 0
    %220 = vmatpush.bf16.xpose.msra.mxu0 0
    %221 = vmatpush.bf16.xpose.msra.mxu0 %v212
    %222 = vmatmul.bf16.gmra.mxu0 %v209
    %v223 = vpop.f32.mrf.mxu0
    %v224 = vadd.f32 0.0, %v223
    %v225 = vpop.f32.mrf.mxu0
    %226 = vdwg.mxu0
    %v228 = vunpack.c.l.b16 %v172
    %v229 = vpack.c.b16 %v228, %v228
    %230 = vrot.lane.b32.xlu0 %v229, 96
    %v231 = vpop.permute.xlu0 %230
    %v233 = vsel %vm183, %v172, 0
    %v236 = vsel %vm183, %v231, 0
    %238 = vmatpush.bf16.xpose.msra.mxu0 0
    %239 = vmatpush.bf16.xpose.msra.mxu0 0
    %240 = vmatpush.bf16.xpose.msra.mxu0 0
    %241 = vmatpush.bf16.xpose.msra.mxu0 0
    %242 = vmatpush.bf16.xpose.msra.mxu0 0
    %243 = vmatpush.bf16.xpose.msra.mxu0 0
    %244 = vmatpush.bf16.xpose.msra.mxu0 0
    %245 = vmatpush.bf16.xpose.msra.mxu0 %v236
    %246 = vmatmul.bf16.gmra.mxu0 %v233
    %v247 = vpop.f32.mrf.mxu0
    %v248 = vadd.f32 0.0, %v247
    %v249 = vpop.f32.mrf.mxu0
    %250 = vdwg.mxu0
    %v252 = vunpack.c.l.b16 %v173
    %v253 = vpack.c.b16 %v252, %v252
    %254 = vrot.lane.b32.xlu0 %v253, 96
    %v255 = vpop.permute.xlu0 %254
    %v257 = vsel %vm183, %v173, 0
    %v260 = vsel %vm183, %v255, 0
    %262 = vmatpush.bf16.xpose.msra.mxu0 0
    %263 = vmatpush.bf16.xpose.msra.mxu0 0
    %264 = vmatpush.bf16.xpose.msra.mxu0 0
    %265 = vmatpush.bf16.xpose.msra.mxu0 0
    %266 = vmatpush.bf16.xpose.msra.mxu0 0
    %267 = vmatpush.bf16.xpose.msra.mxu0 0
    %268 = vmatpush.bf16.xpose.msra.mxu0 0
    %269 = vmatpush.bf16.xpose.msra.mxu0 %v260
    %270 = vmatmul.bf16.gmra.mxu0 %v257
    %v271 = vpop.f32.mrf.mxu0
    %v272 = vadd.f32 0.0, %v271
    %v273 = vpop.f32.mrf.mxu0
    %274 = vdwg.mxu0
    %v276 = vunpack.c.l.b16 %v174
    %v277 = vpack.c.b16 %v276, %v276
    %278 = vrot.lane.b32.xlu0 %v277, 96
    %v279 = vpop.permute.xlu0 %278
    %v281 = vsel %vm183, %v174, 0
    %v284 = vsel %vm183, %v279, 0
    %286 = vmatpush.bf16.xpose.msra.mxu0 0
    %287 = vmatpush.bf16.xpose.msra.mxu0 0
    %288 = vmatpush.bf16.xpose.msra.mxu0 0
    %289 = vmatpush.bf16.xpose.msra.mxu0 0
    %290 = vmatpush.bf16.xpose.msra.mxu0 0
    %291 = vmatpush.bf16.xpose.msra.mxu0 0
    %292 = vmatpush.bf16.xpose.msra.mxu0 0
    %293 = vmatpush.bf16.xpose.msra.mxu0 %v284
    %294 = vmatmul.bf16.gmra.mxu0 %v281
    %v295 = vpop.f32.mrf.mxu0
    %v296 = vadd.f32 0.0, %v295
    %v297 = vpop.f32.mrf.mxu0
    %298 = vdwg.mxu0
    %v300 = vunpack.c.l.b16 %v175
    %v301 = vpack.c.b16 %v300, %v300
    %302 = vrot.lane.b32.xlu0 %v301, 96
    %v303 = vpop.permute.xlu0 %302
    %v305 = vsel %vm183, %v175, 0
    %v308 = vsel %vm183, %v303, 0
    %310 = vmatpush.bf16.xpose.msra.mxu0 0
    %311 = vmatpush.bf16.xpose.msra.mxu0 0
    %312 = vmatpush.bf16.xpose.msra.mxu0 0
    %313 = vmatpush.bf16.xpose.msra.mxu0 0
    %314 = vmatpush.bf16.xpose.msra.mxu0 0
    %315 = vmatpush.bf16.xpose.msra.mxu0 0
    %316 = vmatpush.bf16.xpose.msra.mxu0 0
    %317 = vmatpush.bf16.xpose.msra.mxu0 %v308
    %318 = vmatmul.bf16.gmra.mxu0 %v305
    %v319 = vpop.f32.mrf.mxu0
    %v320 = vadd.f32 0.0, %v319
    %v321 = vpop.f32.mrf.mxu0
    %322 = vdwg.mxu0
    %v324 = vunpack.c.l.b16 %v176
    %v325 = vpack.c.b16 %v324, %v324
    %326 = vrot.lane.b32.xlu0 %v325, 96
    %v327 = vpop.permute.xlu0 %326
    %v329 = vsel %vm183, %v176, 0
    %v332 = vsel %vm183, %v327, 0
    %334 = vmatpush.bf16.xpose.msra.mxu0 0
    %335 = vmatpush.bf16.xpose.msra.mxu0 0
    %336 = vmatpush.bf16.xpose.msra.mxu0 0
    %337 = vmatpush.bf16.xpose.msra.mxu0 0
    %338 = vmatpush.bf16.xpose.msra.mxu0 0
    %339 = vmatpush.bf16.xpose.msra.mxu0 0
    %340 = vmatpush.bf16.xpose.msra.mxu0 0
    %341 = vmatpush.bf16.xpose.msra.mxu0 %v332
    %342 = vmatmul.bf16.gmra.mxu0 %v329
    %v343 = vpop.f32.mrf.mxu0
    %v344 = vadd.f32 0.0, %v343
    %v345 = vpop.f32.mrf.mxu0
    %346 = vdwg.mxu0
    %v348 = vunpack.c.l.b16 %v177
    %v349 = vpack.c.b16 %v348, %v348
    %350 = vrot.lane.b32.xlu0 %v349, 96
    %v351 = vpop.permute.xlu0 %350
    %v353 = vsel %vm183, %v177, 0
    %v356 = vsel %vm183, %v351, 0
    %358 = vmatpush.bf16.xpose.msra.mxu0 0
    %359 = vmatpush.bf16.xpose.msra.mxu0 0
    %360 = vmatpush.bf16.xpose.msra.mxu0 0
    %361 = vmatpush.bf16.xpose.msra.mxu0 0
    %362 = vmatpush.bf16.xpose.msra.mxu0 0
    %363 = vmatpush.bf16.xpose.msra.mxu0 0
    %364 = vmatpush.bf16.xpose.msra.mxu0 0
    %365 = vmatpush.bf16.xpose.msra.mxu0 %v356
    %366 = vmatmul.bf16.gmra.mxu0 %v353
    %v367 = vpop.f32.mrf.mxu0
    %v368 = vadd.f32 0.0, %v367
    %v369 = vpop.f32.mrf.mxu0
    %370 = vdwg.mxu0
    %v371 = vmul.f32 %v200, 0.35355338
    %v372 = vmul.f32 %v224, 0.35355338
    %v373 = vmul.f32 %v248, 0.35355338
    %v374 = vmul.f32 %v272, 0.35355338
    %v375 = vmul.f32 %v296, 0.35355338
    %v376 = vmul.f32 %v320, 0.35355338
    %v377 = vmul.f32 %v344, 0.35355338
    %v378 = vmul.f32 %v368, 0.35355338
    %v379 = vadd.f32 %v371, %v45
    %v380 = vadd.f32 %v372, %v46
    %v381 = vadd.f32 %v373, %v47
    %v382 = vadd.f32 %v374, %v48
    %v383 = vadd.f32 %v375, %v49
    %v384 = vadd.f32 %v376, %v50
    %v385 = vadd.f32 %v377, %v51
    %v386 = vadd.f32 %v378, %v52
    %v387 = vsel %vm183, %v379, -inf
    %388 = vmax.xlane.f32.xlu0 %v387
    %v389 = vpop.xlane.xlu0 %388
    %v390 = vsel %vm183, %v380, -inf
    %391 = vmax.xlane.f32.xlu0 %v390
    %v392 = vpop.xlane.xlu0 %391
    %v393 = vsel %vm183, %v381, -inf
    %394 = vmax.xlane.f32.xlu0 %v393
    %v395 = vpop.xlane.xlu0 %394
    %v396 = vsel %vm183, %v382, -inf
    %397 = vmax.xlane.f32.xlu0 %v396
    %v398 = vpop.xlane.xlu0 %397
    %v399 = vsel %vm183, %v383, -inf
    %400 = vmax.xlane.f32.xlu0 %v399
    %v401 = vpop.xlane.xlu0 %400
    %v402 = vsel %vm183, %v384, -inf
    %403 = vmax.xlane.f32.xlu0 %v402
    %v404 = vpop.xlane.xlu0 %403
    %v405 = vsel %vm183, %v385, -inf
    %406 = vmax.xlane.f32.xlu0 %v405
    %v407 = vpop.xlane.xlu0 %406
    %v408 = vsel %vm183, %v386, -inf
    %409 = vmax.xlane.f32.xlu0 %v408
    %v410 = vpop.xlane.xlu0 %409
    %v411 = vsub.f32 %v379, %v389
    %v412 = vsub.f32 %v380, %v392
    %v413 = vsub.f32 %v381, %v395
    %v414 = vsub.f32 %v382, %v398
    %v415 = vsub.f32 %v383, %v401
    %v416 = vsub.f32 %v384, %v404
    %v417 = vsub.f32 %v385, %v407
    %v418 = vsub.f32 %v386, %v410
    %v419 = vmul.f32 %v411, 1.442695
    %v420 = vpow.pop %v419
    %v421 = vmul.f32 %v412, 1.442695
    %v422 = vpow.pop %v421
    %v423 = vmul.f32 %v413, 1.442695
    %v424 = vpow.pop %v423
    %v425 = vmul.f32 %v414, 1.442695
    %v426 = vpow.pop %v425
    %v427 = vmul.f32 %v415, 1.442695
    %v428 = vpow.pop %v427
    %v429 = vmul.f32 %v416, 1.442695
    %v430 = vpow.pop %v429
    %v431 = vmul.f32 %v417, 1.442695
    %v432 = vpow.pop %v431
    %v433 = vmul.f32 %v418, 1.442695
    %v434 = vpow.pop %v433
    %v435 = vsel %vm183, %v420, 0.0
    %436 = vadd.xlane.f32.xlu0 %v435
    %v437 = vpop.xlane.xlu0 %436
    %v438 = vsel %vm183, %v422, 0.0
    %439 = vadd.xlane.f32.xlu0 %v438
    %v440 = vpop.xlane.xlu0 %439
    %v441 = vsel %vm183, %v424, 0.0
    %442 = vadd.xlane.f32.xlu0 %v441
    %v443 = vpop.xlane.xlu0 %442
    %v444 = vsel %vm183, %v426, 0.0
    %445 = vadd.xlane.f32.xlu0 %v444
    %v446 = vpop.xlane.xlu0 %445
    %v447 = vsel %vm183, %v428, 0.0
    %448 = vadd.xlane.f32.xlu0 %v447
    %v449 = vpop.xlane.xlu0 %448
    %v450 = vsel %vm183, %v430, 0.0
    %451 = vadd.xlane.f32.xlu0 %v450
    %v452 = vpop.xlane.xlu0 %451
    %v453 = vsel %vm183, %v432, 0.0
    %454 = vadd.xlane.f32.xlu0 %v453
    %v455 = vpop.xlane.xlu0 %454
    %v456 = vsel %vm183, %v434, 0.0
    %457 = vadd.xlane.f32.xlu0 %v456
    %v458 = vpop.xlane.xlu0 %457
    %v459 = vrcp.pop %v437
    %v460 = vrcp.pop %v440
    %v461 = vrcp.pop %v443
    %v462 = vrcp.pop %v446
    %v463 = vrcp.pop %v449
    %v464 = vrcp.pop %v452
    %v465 = vrcp.pop %v455
    %v466 = vrcp.pop %v458
    %v467 = vmul.f32 %v420, %v459
    %v468 = vmul.f32 %v422, %v460
    %v469 = vmul.f32 %v424, %v461
    %v470 = vmul.f32 %v426, %v462
    %v471 = vmul.f32 %v428, %v463
    %v472 = vmul.f32 %v430, %v464
    %v473 = vmul.f32 %v432, %v465
    %v474 = vmul.f32 %v434, %v466
    %v475 = vpack.c.bf16 %v467, %v467
    %v476 = vpack.c.bf16 %v468, %v468
    %v477 = vpack.c.bf16 %v469, %v469
    %v478 = vpack.c.bf16 %v470, %v470
    %v479 = vpack.c.bf16 %v471, %v471
    %v480 = vpack.c.bf16 %v472, %v472
    %v481 = vpack.c.bf16 %v473, %v473
    %v482 = vpack.c.bf16 %v474, %v474
    %483 = vrot.lane.b32.xlu0 %v180, 64
    %v484 = vpop.permute.xlu0 %483
    %v486 = vsel %vm183, %v475, 0
    %vm488 = vcmask 1043456
    %v490 = vsel %vm488, %v484, 0
    %492 = vmatpush.bf16.msra.mxu0 0
    %493 = vmatpush.bf16.msra.mxu0 0
    %494 = vmatpush.bf16.msra.mxu0 0
    %495 = vmatpush.bf16.msra.mxu0 0
    %496 = vmatpush.bf16.msra.mxu0 0
    %497 = vmatpush.bf16.msra.mxu0 0
    %498 = vmatpush.bf16.msra.mxu0 0
    %499 = vmatpush.bf16.msra.mxu0 %v490
    %500 = vmatmul.bf16.gmra.mxu0 %v486
    %v501 = vpop.f32.mrf.mxu0
    %v502 = vadd.f32 0.0, %v501
    %v503 = vpop.f32.mrf.mxu0
    %504 = vdwg.mxu0
    %505 = vrot.lane.b32.xlu0 %v205, 64
    %v506 = vpop.permute.xlu0 %505
    %v508 = vsel %vm183, %v476, 0
    %v511 = vsel %vm488, %v506, 0
    %513 = vmatpush.bf16.msra.mxu0 0
    %514 = vmatpush.bf16.msra.mxu0 0
    %515 = vmatpush.bf16.msra.mxu0 0
    %516 = vmatpush.bf16.msra.mxu0 0
    %517 = vmatpush.bf16.msra.mxu0 0
    %518 = vmatpush.bf16.msra.mxu0 0
    %519 = vmatpush.bf16.msra.mxu0 0
    %520 = vmatpush.bf16.msra.mxu0 %v511
    %521 = vmatmul.bf16.gmra.mxu0 %v508
    %v522 = vpop.f32.mrf.mxu0
    %v523 = vadd.f32 0.0, %v522
    %v524 = vpop.f32.mrf.mxu0
    %525 = vdwg.mxu0
    %526 = vrot.lane.b32.xlu0 %v229, 64
    %v527 = vpop.permute.xlu0 %526
    %v529 = vsel %vm183, %v477, 0
    %v532 = vsel %vm488, %v527, 0
    %534 = vmatpush.bf16.msra.mxu0 0
    %535 = vmatpush.bf16.msra.mxu0 0
    %536 = vmatpush.bf16.msra.mxu0 0
    %537 = vmatpush.bf16.msra.mxu0 0
    %538 = vmatpush.bf16.msra.mxu0 0
    %539 = vmatpush.bf16.msra.mxu0 0
    %540 = vmatpush.bf16.msra.mxu0 0
    %541 = vmatpush.bf16.msra.mxu0 %v532
    %542 = vmatmul.bf16.gmra.mxu0 %v529
    %v543 = vpop.f32.mrf.mxu0
    %v544 = vadd.f32 0.0, %v543
    %v545 = vpop.f32.mrf.mxu0
    %546 = vdwg.mxu0
    %547 = vrot.lane.b32.xlu0 %v253, 64
    %v548 = vpop.permute.xlu0 %547
    %v550 = vsel %vm183, %v478, 0
    %v553 = vsel %vm488, %v548, 0
    %555 = vmatpush.bf16.msra.mxu0 0
    %556 = vmatpush.bf16.msra.mxu0 0
    %557 = vmatpush.bf16.msra.mxu0 0
    %558 = vmatpush.bf16.msra.mxu0 0
    %559 = vmatpush.bf16.msra.mxu0 0
    %560 = vmatpush.bf16.msra.mxu0 0
    %561 = vmatpush.bf16.msra.mxu0 0
    %562 = vmatpush.bf16.msra.mxu0 %v553
    %563 = vmatmul.bf16.gmra.mxu0 %v550
    %v564 = vpop.f32.mrf.mxu0
    %v565 = vadd.f32 0.0, %v564
    %v566 = vpop.f32.mrf.mxu0
    %567 = vdwg.mxu0
    %568 = vrot.lane.b32.xlu0 %v277, 64
    %v569 = vpop.permute.xlu0 %568
    %v571 = vsel %vm183, %v479, 0
    %v574 = vsel %vm488, %v569, 0
    %576 = vmatpush.bf16.msra.mxu0 0
    %577 = vmatpush.bf16.msra.mxu0 0
    %578 = vmatpush.bf16.msra.mxu0 0
    %579 = vmatpush.bf16.msra.mxu0 0
    %580 = vmatpush.bf16.msra.mxu0 0
    %581 = vmatpush.bf16.msra.mxu0 0
    %582 = vmatpush.bf16.msra.mxu0 0
    %583 = vmatpush.bf16.msra.mxu0 %v574
    %584 = vmatmul.bf16.gmra.mxu0 %v571
    %v585 = vpop.f32.mrf.mxu0
    %v586 = vadd.f32 0.0, %v585
    %v587 = vpop.f32.mrf.mxu0
    %588 = vdwg.mxu0
    %589 = vrot.lane.b32.xlu0 %v301, 64
    %v590 = vpop.permute.xlu0 %589
    %v592 = vsel %vm183, %v480, 0
    %v595 = vsel %vm488, %v590, 0
    %597 = vmatpush.bf16.msra.mxu0 0
    %598 = vmatpush.bf16.msra.mxu0 0
    %599 = vmatpush.bf16.msra.mxu0 0
    %600 = vmatpush.bf16.msra.mxu0 0
    %601 = vmatpush.bf16.msra.mxu0 0
    %602 = vmatpush.bf16.msra.mxu0 0
    %603 = vmatpush.bf16.msra.mxu0 0
    %604 = vmatpush.bf16.msra.mxu0 %v595
    %605 = vmatmul.bf16.gmra.mxu0 %v592
    %v606 = vpop.f32.mrf.mxu0
    %v607 = vadd.f32 0.0, %v606
    %v608 = vpop.f32.mrf.mxu0
    %609 = vdwg.mxu0
    %610 = vrot.lane.b32.xlu0 %v325, 64
    %v611 = vpop.permute.xlu0 %610
    %v613 = vsel %vm183, %v481, 0
    %v616 = vsel %vm488, %v611, 0
    %618 = vmatpush.bf16.msra.mxu0 0
    %619 = vmatpush.bf16.msra.mxu0 0
    %620 = vmatpush.bf16.msra.mxu0 0
    %621 = vmatpush.bf16.msra.mxu0 0
    %622 = vmatpush.bf16.msra.mxu0 0
    %623 = vmatpush.bf16.msra.mxu0 0
    %624 = vmatpush.bf16.msra.mxu0 0
    %625 = vmatpush.bf16.msra.mxu0 %v616
    %626 = vmatmul.bf16.gmra.mxu0 %v613
    %v627 = vpop.f32.mrf.mxu0
    %v628 = vadd.f32 0.0, %v627
    %v629 = vpop.f32.mrf.mxu0
    %630 = vdwg.mxu0
    %631 = vrot.lane.b32.xlu0 %v349, 64
    %v632 = vpop.permute.xlu0 %631
    %v634 = vsel %vm183, %v482, 0
    %v637 = vsel %vm488, %v632, 0
    %639 = vmatpush.bf16.msra.mxu0 0
    %640 = vmatpush.bf16.msra.mxu0 0
    %641 = vmatpush.bf16.msra.mxu0 0
    %642 = vmatpush.bf16.msra.mxu0 0
    %643 = vmatpush.bf16.msra.mxu0 0
    %644 = vmatpush.bf16.msra.mxu0 0
    %645 = vmatpush.bf16.msra.mxu0 0
    %646 = vmatpush.bf16.msra.mxu0 %v637
    %647 = vmatmul.bf16.gmra.mxu0 %v634
    %v648 = vpop.f32.mrf.mxu0
    %v649 = vadd.f32 0.0, %v648
    %v650 = vpop.f32.mrf.mxu0
    %651 = vdwg.mxu0
    %654 = vrot.lane.b32.xlu0 %v544, 8
    %v655 = vpop.permute.xlu0 %654
    %656 = vrot.lane.b32.xlu0 %v565, 8
    %v657 = vpop.permute.xlu0 %656
    %662 = vrot.lane.b32.xlu0 %v586, 16
    %v663 = vpop.permute.xlu0 %662
    %664 = vrot.lane.b32.xlu0 %v607, 16
    %v665 = vpop.permute.xlu0 %664
    %670 = vrot.lane.b32.xlu0 %v628, 24
    %v671 = vpop.permute.xlu0 %670
    %672 = vrot.lane.b32.xlu0 %v649, 24
    %v673 = vpop.permute.xlu0 %672
    %v676 = vsel %vm183, %v502, %v655
    %v677 = vsel %vm183, %v523, %v657
    %vm678 = vcmask 130048
    %v679 = vsel %vm678, %v676, %v663
    %v680 = vsel %vm678, %v677, %v665
    %vm681 = vcmask 195584
    %v682 = vsel %vm681, %v679, %v671
    %v683 = vsel %vm681, %v680, %v673
    %v684 = vpack.c.bf16 %v683, %v682
    %v685 = vld [vmem:[%s6] sm:$0xf]
    %v686 = vld [vmem:[%s6 + $0x4] sm:$0xf]
    %v687 = vld [vmem:[%s6 + $0x8] sm:$0xf]
    %v688 = vld [vmem:[%s6 + $0xc] sm:$0xf]
    %v689 = vperm.slane %v53, 4
    %v694 = vunpack.c.l.b16 %v685
    %v695 = vunpack.c.l.b16 %v686
    %v696 = vunpack.c.l.b16 %v687
    %v697 = vunpack.c.l.b16 %v688
    %v698 = vpack.c.b16 %v695, %v694
    %v699 = vpack.c.b16 %v697, %v696
    %v703 = vsel %vm54, %v684, 0
    %705 = vmatpush.bf16.msra.mxu0 0
    %706 = vmatpush.bf16.msra.mxu0 0
    %707 = vmatpush.bf16.msra.mxu0 0
    %708 = vmatpush.bf16.msra.mxu0 0
    %709 = vmatpush.bf16.msra.mxu0 0
    %710 = vmatpush.bf16.msra.mxu0 0
    %711 = vmatpush.bf16.msra.mxu0 %v699
    %712 = vmatpush.bf16.msra.mxu0 %v698
    %713 = vmatmul.bf16.gmra.mxu0 %v703
    %v714 = vpop.f32.mrf.mxu0
    %v715 = vadd.f32 %v689, %v714
    %v716 = vpop.f32.mrf.mxu0
    %v717 = vadd.f32 %v689, %v716
    %718 = vdwg.mxu0
    %v719 = vadd.f32 %v43, %v715
    %v720 = vadd.f32 %v44, %v717
    %v721 = vsel %vm54, %v719, 0.0
    %722 = vadd.xlane.f32.xlu0 %v721
    %v723 = vpop.xlane.xlu0 %722
    %v724 = vsel %vm54, %v720, 0.0
    %725 = vadd.xlane.f32.xlu0 %v724
    %v726 = vpop.xlane.xlu0 %725
    %v727 = vmul.f32 %v723, %v67
    %v728 = vmul.f32 %v726, %v67
    %v729 = vsub.f32 %v719, %v727
    %v730 = vsub.f32 %v720, %v728
    %v731 = vmul.f32 %v729, %v729
    %v732 = vmul.f32 %v730, %v730
    %v733 = vsel %vm54, %v731, 0.0
    %734 = vadd.xlane.f32.xlu0 %v733
    %v735 = vpop.xlane.xlu0 %734
    %v736 = vsel %vm54, %v732, 0.0
    %737 = vadd.xlane.f32.xlu0 %v736
    %v738 = vpop.xlane.xlu0 %737
    %v739 = vmul.f32 %v735, %v67
    %v740 = vmul.f32 %v738, %v67
    %v741 = vadd.f32 %v739, 1e-05
    %v742 = vadd.f32 %v740, 1e-05
    %v743 = vrsqrt.pop %v741
    %v744 = vmul.f32 %v743, %v741
    %v745 = vmul.f32 %v744, %v743
    %v746 = vmul.f32 0.5, %v745
    %v747 = vsub.f32 1.5, %v746
    %v748 = vmul.f32 %v743, %v747
    %vm749 = vweird.f32 %v741
    %vm750 = vweird.f32 %v743
    %vm751 = vmor %vm749, %vm750
    %v752 = vsel %vm751, %v743, %v748
    %v753 = vrsqrt.pop %v742
    %v754 = vmul.f32 %v753, %v742
    %v755 = vmul.f32 %v754, %v753
    %v756 = vmul.f32 0.5, %v755
    %v757 = vsub.f32 1.5, %v756
    %v758 = vmul.f32 %v753, %v757
    %vm759 = vweird.f32 %v742
    %vm760 = vweird.f32 %v753
    %vm761 = vmor %vm759, %vm760
    %v762 = vsel %vm761, %v753, %v758
    %v763 = vmul.f32 %v729, %v752
    %v764 = vmul.f32 %v730, %v762
    %v765 = vperm.slane %v53, 2
    %v766 = vmul.f32 %v763, %v765
    %v767 = vmul.f32 %v764, %v765
    %v768 = vperm.slane %v53, 3
    %v769 = vadd.f32 %v766, %v768
    %v770 = vadd.f32 %v767, %v768
    %v771 = vpack.c.bf16 %v770, %v769
    %v772 = vld [vmem:[%s7] sm:$0xf]
    %v773 = vld [vmem:[%s7 + $0x4] sm:$0xf]
    %v774 = vld [vmem:[%s7 + $0x8] sm:$0xf]
    %v775 = vld [vmem:[%s7 + $0xc] sm:$0xf]
    %v776 = vld [vmem:[%s8] sm:$0x1]
    %v778 = vperm.slane %v776, 0
    %v784 = vunpack.c.l.b16 %v772
    %v785 = vunpack.c.l.b16 %v773
    %v786 = vunpack.c.l.b16 %v774
    %v787 = vunpack.c.l.b16 %v775
    %v788 = vpack.c.b16 %v785, %v784
    %v789 = vpack.c.b16 %v787, %v786
    %v793 = vsel %vm54, %v771, 0
    %795 = vmatpush.bf16.msra.mxu0 0
    %796 = vmatpush.bf16.msra.mxu0 0
    %797 = vmatpush.bf16.msra.mxu0 0
    %798 = vmatpush.bf16.msra.mxu0 0
    %799 = vmatpush.bf16.msra.mxu0 0
    %800 = vmatpush.bf16.msra.mxu0 0
    %801 = vmatpush.bf16.msra.mxu0 %v789
    %802 = vmatpush.bf16.msra.mxu0 %v788
    %803 = vmatmul.bf16.gmra.mxu0 %v793
    %v804 = vpop.f32.mrf.mxu0
    %v805 = vadd.f32 %v778, %v804
    %v806 = vpop.f32.mrf.mxu0
    %v807 = vadd.f32 %v778, %v806
    %808 = vdwg.mxu0
    %v809 = vmul.f32 %v805, 0.5
    %v810 = vmul.f32 %v807, 0.5
    %v811 = vmul.f32 %v805, 0.044715
    %v812 = vmul.f32 %v807, 0.044715
    %v813 = vmul.f32 %v811, %v805
    %v814 = vmul.f32 %v812, %v807
    %v815 = vmul.f32 %v813, %v805
    %v816 = vmul.f32 %v814, %v807
    %v817 = vadd.f32 %v805, %v815
    %v818 = vadd.f32 %v807, %v816
    %v819 = vmul.f32 %v817, 0.7978846
    %v820 = vmul.f32 %v818, 0.7978846
    %v821 = vtanh.pop %v819
    %v822 = vtanh.pop %v820
    %v823 = vadd.f32 %v821, 1.0
    %v824 = vadd.f32 %v822, 1.0
    %v825 = vmul.f32 %v809, %v823
    %v826 = vmul.f32 %v810, %v824
    %v827 = vpack.c.bf16 %v826, %v825
    %v828 = vld [vmem:[%s9] sm:$0xf]
    %v829 = vld [vmem:[%s9 + $0x4] sm:$0xf]
    %v830 = vld [vmem:[%s9 + $0x8] sm:$0xf]
    %v831 = vld [vmem:[%s9 + $0xc] sm:$0xf]
    %v832 = vld [vmem:[%s9 + $0x10] sm:$0xf]
    %v833 = vld [vmem:[%s9 + $0x14] sm:$0xf]
    %v834 = vld [vmem:[%s9 + $0x18] sm:$0xf]
    %v835 = vld [vmem:[%s9 + $0x1c] sm:$0xf]
    %v836 = vld [vmem:[%s9 + $0x20] sm:$0xf]
    %v837 = vld [vmem:[%s9 + $0x24] sm:$0xf]
    %v838 = vld [vmem:[%s9 + $0x28] sm:$0xf]
    %v839 = vld [vmem:[%s9 + $0x2c] sm:$0xf]
    %v840 = vld [vmem:[%s9 + $0x30] sm:$0xf]
    %v841 = vld [vmem:[%s9 + $0x34] sm:$0xf]
    %v842 = vld [vmem:[%s9 + $0x38] sm:$0xf]
    %v843 = vld [vmem:[%s9 + $0x3c] sm:$0xf]
    %v844 = vperm.slane %v53, 5
    %v861 = vunpack.c.l.b16 %v828
    %v862 = vunpack.c.l.b16 %v829
    %v863 = vunpack.c.l.b16 %v830
    %v864 = vunpack.c.l.b16 %v831
    %v865 = vunpack.c.l.b16 %v832
    %v866 = vunpack.c.l.b16 %v833
    %v867 = vunpack.c.l.b16 %v834
    %v868 = vunpack.c.l.b16 %v835
    %v869 = vunpack.c.l.b16 %v836
    %v870 = vunpack.c.l.b16 %v837
    %v871 = vunpack.c.l.b16 %v838
    %v872 = vunpack.c.l.b16 %v839
    %v873 = vunpack.c.l.b16 %v840
    %v874 = vunpack.c.l.b16 %v841
    %v875 = vunpack.c.l.b16 %v842
    %v876 = vunpack.c.l.b16 %v843
    %v877 = vpack.c.b16 %v862, %v861
    %v878 = vpack.c.b16 %v864, %v863
    %v879 = vpack.c.b16 %v866, %v865
    %v880 = vpack.c.b16 %v868, %v867
    %v881 = vpack.c.b16 %v870, %v869
    %v882 = vpack.c.b16 %v872, %v871
    %v883 = vpack.c.b16 %v874, %v873
    %v884 = vpack.c.b16 %v876, %v875
    %893 = vmatpush.bf16.msra.mxu0 %v884
    %894 = vmatpush.bf16.msra.mxu0 %v883
    %895 = vmatpush.bf16.msra.mxu0 %v882
    %896 = vmatpush.bf16.msra.mxu0 %v881
    %897 = vmatpush.bf16.msra.mxu0 %v880
    %898 = vmatpush.bf16.msra.mxu0 %v879
    %899 = vmatpush.bf16.msra.mxu0 %v878
    %900 = vmatpush.bf16.msra.mxu0 %v877
    %901 = vmatmul.bf16.gmra.mxu0 %v827
    %v902 = vpop.f32.mrf.mxu0
    %v903 = vadd.f32 %v844, %v902
    %v904 = vpop.f32.mrf.mxu0
    %v905 = vadd.f32 %v844, %v904
    %906 = vdwg.mxu0
    %v907 = vadd.f32 %v719, %v903
    %v908 = vadd.f32 %v720, %v905
    %s909 = scalar_lea.vmem %s3, 8
    %v910 = vld [vmem:[%s909] sm:$0x3f]
    %v911 = vsel %vm54, %v907, 0.0
    %912 = vadd.xlane.f32.xlu0 %v911
    %v913 = vpop.xlane.xlu0 %912
    %v914 = vsel %vm54, %v908, 0.0
    %915 = vadd.xlane.f32.xlu0 %v914
    %v916 = vpop.xlane.xlu0 %915
    %v917 = vmul.f32 %v913, %v67
    %v918 = vmul.f32 %v916, %v67
    %v919 = vsub.f32 %v907, %v917
    %v920 = vsub.f32 %v908, %v918
    %v921 = vmul.f32 %v919, %v919
    %v922 = vmul.f32 %v920, %v920
    %v923 = vsel %vm54, %v921, 0.0
    %924 = vadd.xlane.f32.xlu0 %v923
    %v925 = vpop.xlane.xlu0 %924
    %v926 = vsel %vm54, %v922, 0.0
    %927 = vadd.xlane.f32.xlu0 %v926
    %v928 = vpop.xlane.xlu0 %927
    %v929 = vmul.f32 %v925, %v67
    %v930 = vmul.f32 %v928, %v67
    %v931 = vadd.f32 %v929, 1e-05
    %v932 = vadd.f32 %v930, 1e-05
    %v933 = vrsqrt.pop %v931
    %v934 = vmul.f32 %v933, %v931
    %v935 = vmul.f32 %v934, %v933
    %v936 = vmul.f32 0.5, %v935
    %v937 = vsub.f32 1.5, %v936
    %v938 = vmul.f32 %v933, %v937
    %vm939 = vweird.f32 %v931
    %vm940 = vweird.f32 %v933
    %vm941 = vmor %vm939, %vm940
    %v942 = vsel %vm941, %v933, %v938
    %v943 = vrsqrt.pop %v932
    %v944 = vmul.f32 %v943, %v932
    %v945 = vmul.f32 %v944, %v943
    %v946 = vmul.f32 0.5, %v945
    %v947 = vsub.f32 1.5, %v946
    %v948 = vmul.f32 %v943, %v947
    %vm949 = vweird.f32 %v932
    %vm950 = vweird.f32 %v943
    %vm951 = vmor %vm949, %vm950
    %v952 = vsel %vm951, %v943, %v948
    %v953 = vmul.f32 %v919, %v942
    %v954 = vmul.f32 %v920, %v952
    %v955 = vperm.slane %v910, 0
    %v956 = vmul.f32 %v953, %v955
    %v957 = vmul.f32 %v954, %v955
    %v958 = vperm.slane %v910, 1
    %v959 = vadd.f32 %v956, %v958
    %v960 = vadd.f32 %v957, %v958
    %v961 = vpack.c.bf16 %v960, %v959
    %s962 = scalar_lea.vmem %s4, 16
    %v963 = vld [vmem:[%s962] sm:$0xf]
    %v964 = vld [vmem:[%s962 + $0x4] sm:$0xf]
    %v965 = vld [vmem:[%s962 + $0x8] sm:$0xf]
    %v966 = vld [vmem:[%s962 + $0xc] sm:$0xf]
    %s967 = scalar_lea.vmem %s5, 1
    %v968 = vld [vmem:[%s967] sm:$0x1]
    %v970 = vperm.slane %v968, 0
    %v976 = vunpack.c.l.b16 %v963
    %v977 = vunpack.c.l.b16 %v964
    %v978 = vunpack.c.l.b16 %v965
    %v979 = vunpack.c.l.b16 %v966
    %v980 = vpack.c.b16 %v977, %v976
    %v981 = vpack.c.b16 %v979, %v978
    %v985 = vsel %vm54, %v961, 0
    %987 = vmatpush.bf16.msra.mxu0 0
    %988 = vmatpush.bf16.msra.mxu0 0
    %989 = vmatpush.bf16.msra.mxu0 0
    %990 = vmatpush.bf16.msra.mxu0 0
    %991 = vmatpush.bf16.msra.mxu0 0
    %992 = vmatpush.bf16.msra.mxu0 0
    %993 = vmatpush.bf16.msra.mxu0 %v981
    %994 = vmatpush.bf16.msra.mxu0 %v980
    %995 = vmatmul.bf16.gmra.mxu0 %v985
    %v996 = vpop.f32.mrf.mxu0
    %v997 = vadd.f32 %v970, %v996
    %v998 = vpop.f32.mrf.mxu0
    %v999 = vadd.f32 %v970, %v998
    %1000 = vdwg.mxu0
    %1003 = vrot.lane.b32.xlu0 %v997, 120
    %v1004 = vpop.permute.xlu0 %1003
    %1005 = vrot.lane.b32.xlu0 %v999, 120
    %v1006 = vpop.permute.xlu0 %1005
    %1009 = vrot.lane.b32.xlu0 %v997, 112
    %v1010 = vpop.permute.xlu0 %1009
    %1011 = vrot.lane.b32.xlu0 %v999, 112
    %v1012 = vpop.permute.xlu0 %1011
    %1015 = vrot.lane.b32.xlu0 %v997, 104
    %v1016 = vpop.permute.xlu0 %1015
    %1017 = vrot.lane.b32.xlu0 %v999, 104
    %v1018 = vpop.permute.xlu0 %1017
    %v1021 = vpack.c.bf16 %v997, %v997
    %v1022 = vpack.c.bf16 %v999, %v999
    %v1023 = vpack.c.bf16 %v1004, %v1004
    %v1024 = vpack.c.bf16 %v1006, %v1006
    %v1025 = vpack.c.bf16 %v1010, %v1010
    %v1026 = vpack.c.bf16 %v1012, %v1012
    %v1027 = vpack.c.bf16 %v1016, %v1016
    %v1028 = vpack.c.bf16 %v1018, %v1018
    %v1030 = vunpack.c.l.b16 %v1021
    %v1031 = vpack.c.b16 %v1030, %v1030
    %1032 = vrot.lane.b32.xlu0 %v1031, 96
    %v1033 = vpop.permute.xlu0 %1032
    %v1035 = vsel %vm183, %v1021, 0
    %v1038 = vsel %vm183, %v1033, 0
    %1040 = vmatpush.bf16.xpose.msra.mxu0 0
    %1041 = vmatpush.bf16.xpose.msra.mxu0 0
    %1042 = vmatpush.bf16.xpose.msra.mxu0 0
    %1043 = vmatpush.bf16.xpose.msra.mxu0 0
    %1044 = vmatpush.bf16.xpose.msra.mxu0 0
    %1045 = vmatpush.bf16.xpose.msra.mxu0 0
    %1046 = vmatpush.bf16.xpose.msra.mxu0 0
    %1047 = vmatpush.bf16.xpose.msra.mxu0 %v1038
    %1048 = vmatmul.bf16.gmra.mxu0 %v1035
    %v1049 = vpop.f32.mrf.mxu0
    %v1050 = vadd.f32 0.0, %v1049
    %v1051 = vpop.f32.mrf.mxu0
    %1052 = vdwg.mxu0
    %v1054 = vunpack.c.l.b16 %v1022
    %v1055 = vpack.c.b16 %v1054, %v1054
    %1056 = vrot.lane.b32.xlu0 %v1055, 96
    %v1057 = vpop.permute.xlu0 %1056
    %v1059 = vsel %vm183, %v1022, 0
    %v1062 = vsel %vm183, %v1057, 0
    %1064 = vmatpush.bf16.xpose.msra.mxu0 0
    %1065 = vmatpush.bf16.xpose.msra.mxu0 0
    %1066 = vmatpush.bf16.xpose.msra.mxu0 0
    %1067 = vmatpush.bf16.xpose.msra.mxu0 0
    %1068 = vmatpush.bf16.xpose.msra.mxu0 0
    %1069 = vmatpush.bf16.xpose.msra.mxu0 0
    %1070 = vmatpush.bf16.xpose.msra.mxu0 0
    %1071 = vmatpush.bf16.xpose.msra.mxu0 %v1062
    %1072 = vmatmul.bf16.gmra.mxu0 %v1059
    %v1073 = vpop.f32.mrf.mxu0
    %v1074 = vadd.f32 0.0, %v1073
    %v1075 = vpop.f32.mrf.mxu0
    %1076 = vdwg.mxu0
    %v1078 = vunpack.c.l.b16 %v1023
    %v1079 = vpack.c.b16 %v1078, %v1078
    %1080 = vrot.lane.b32.xlu0 %v1079, 96
    %v1081 = vpop.permute.xlu0 %1080
    %v1083 = vsel %vm183, %v1023, 0
    %v1086 = vsel %vm183, %v1081, 0
    %1088 = vmatpush.bf16.xpose.msra.mxu0 0
    %1089 = vmatpush.bf16.xpose.msra.mxu0 0
    %1090 = vmatpush.bf16.xpose.msra.mxu0 0
    %1091 = vmatpush.bf16.xpose.msra.mxu0 0
    %1092 = vmatpush.bf16.xpose.msra.mxu0 0
    %1093 = vmatpush.bf16.xpose.msra.mxu0 0
    %1094 = vmatpush.bf16.xpose.msra.mxu0 0
    %1095 = vmatpush.bf16.xpose.msra.mxu0 %v1086
    %1096 = vmatmul.bf16.gmra.mxu0 %v1083
    %v1097 = vpop.f32.mrf.mxu0
    %v1098 = vadd.f32 0.0, %v1097
    %v1099 = vpop.f32.mrf.mxu0
    %1100 = vdwg.mxu0
    %v1102 = vunpack.c.l.b16 %v1024
    %v1103 = vpack.c.b16 %v1102, %v1102
    %1104 = vrot.lane.b32.xlu0 %v1103, 96
    %v1105 = vpop.permute.xlu0 %1104
    %v1107 = vsel %vm183, %v1024, 0
    %v1110 = vsel %vm183, %v1105, 0
    %1112 = vmatpush.bf16.xpose.msra.mxu0 0
    %1113 = vmatpush.bf16.xpose.msra.mxu0 0
    %1114 = vmatpush.bf16.xpose.msra.mxu0 0
    %1115 = vmatpush.bf16.xpose.msra.mxu0 0
    %1116 = vmatpush.bf16.xpose.msra.mxu0 0
    %1117 = vmatpush.bf16.xpose.msra.mxu0 0
    %1118 = vmatpush.bf16.xpose.msra.mxu0 0
    %1119 = vmatpush.bf16.xpose.msra.mxu0 %v1110
    %1120 = vmatmul.bf16.gmra.mxu0 %v1107
    %v1121 = vpop.f32.mrf.mxu0
    %v1122 = vadd.f32 0.0, %v1121
    %v1123 = vpop.f32.mrf.mxu0
    %1124 = vdwg.mxu0
    %v1126 = vunpack.c.l.b16 %v1025
    %v1127 = vpack.c.b16 %v1126, %v1126
    %1128 = vrot.lane.b32.xlu0 %v1127, 96
    %v1129 = vpop.permute.xlu0 %1128
    %v1131 = vsel %vm183, %v1025, 0
    %v1134 = vsel %vm183, %v1129, 0
    %1136 = vmatpush.bf16.xpose.msra.mxu0 0
    %1137 = vmatpush.bf16.xpose.msra.mxu0 0
    %1138 = vmatpush.bf16.xpose.msra.mxu0 0
    %1139 = vmatpush.bf16.xpose.msra.mxu0 0
    %1140 = vmatpush.bf16.xpose.msra.mxu0 0
    %1141 = vmatpush.bf16.xpose.msra.mxu0 0
    %1142 = vmatpush.bf16.xpose.msra.mxu0 0
    %1143 = vmatpush.bf16.xpose.msra.mxu0 %v1134
    %1144 = vmatmul.bf16.gmra.mxu0 %v1131
    %v1145 = vpop.f32.mrf.mxu0
    %v1146 = vadd.f32 0.0, %v1145
    %v1147 = vpop.f32.mrf.mxu0
    %1148 = vdwg.mxu0
    %v1150 = vunpack.c.l.b16 %v1026
    %v1151 = vpack.c.b16 %v1150, %v1150
    %1152 = vrot.lane.b32.xlu0 %v1151, 96
    %v1153 = vpop.permute.xlu0 %1152
    %v1155 = vsel %vm183, %v1026, 0
    %v1158 = vsel %vm183, %v1153, 0
    %1160 = vmatpush.bf16.xpose.msra.mxu0 0
    %1161 = vmatpush.bf16.xpose.msra.mxu0 0
    %1162 = vmatpush.bf16.xpose.msra.mxu0 0
    %1163 = vmatpush.bf16.xpose.msra.mxu0 0
    %1164 = vmatpush.bf16.xpose.msra.mxu0 0
    %1165 = vmatpush.bf16.xpose.msra.mxu0 0
    %1166 = vmatpush.bf16.xpose.msra.mxu0 0
    %1167 = vmatpush.bf16.xpose.msra.mxu0 %v1158
    %1168 = vmatmul.bf16.gmra.mxu0 %v1155
    %v1169 = vpop.f32.mrf.mxu0
    %v1170 = vadd.f32 0.0, %v1169
    %v1171 = vpop.f32.mrf.mxu0
    %1172 = vdwg.mxu0
    %v1174 = vunpack.c.l.b16 %v1027
    %v1175 = vpack.c.b16 %v1174, %v1174
    %1176 = vrot.lane.b32.xlu0 %v1175, 96
    %v1177 = vpop.permute.xlu0 %1176
    %v1179 = vsel %vm183, %v1027, 0
    %v1182 = vsel %vm183, %v1177, 0
    %1184 = vmatpush.bf16.xpose.msra.mxu0 0
    %1185 = vmatpush.bf16.xpose.msra.mxu0 0
    %1186 = vmatpush.bf16.xpose.msra.mxu0 0
    %1187 = vmatpush.bf16.xpose.msra.mxu0 0
    %1188 = vmatpush.bf16.xpose.msra.mxu0 0
    %1189 = vmatpush.bf16.xpose.msra.mxu0 0
    %1190 = vmatpush.bf16.xpose.msra.mxu0 0
    %1191 = vmatpush.bf16.xpose.msra.mxu0 %v1182
    %1192 = vmatmul.bf16.gmra.mxu0 %v1179
    %v1193 = vpop.f32.mrf.mxu0
    %v1194 = vadd.f32 0.0, %v1193
    %v1195 = vpop.f32.mrf.mxu0
    %1196 = vdwg.mxu0
    %v1198 = vunpack.c.l.b16 %v1028
    %v1199 = vpack.c.b16 %v1198, %v1198
    %1200 = vrot.lane.b32.xlu0 %v1199, 96
    %v1201 = vpop.permute.xlu0 %1200
    %v1203 = vsel %vm183, %v1028, 0
    %v1206 = vsel %vm183, %v1201, 0
    %1208 = vmatpush.bf16.xpose.msra.mxu0 0
    %1209 = vmatpush.bf16.xpose.msra.mxu0 0
    %1210 = vmatpush.bf16.xpose.msra.mxu0 0
    %1211 = vmatpush.bf16.xpose.msra.mxu0 0
    %1212 = vmatpush.bf16.xpose.msra.mxu0 0
    %1213 = vmatpush.bf16.xpose.msra.mxu0 0
    %1214 = vmatpush.bf16.xpose.msra.mxu0 0
    %1215 = vmatpush.bf16.xpose.msra.mxu0 %v1206
    %1216 = vmatmul.bf16.gmra.mxu0 %v1203
    %v1217 = vpop.f32.mrf.mxu0
    %v1218 = vadd.f32 0.0, %v1217
    %v1219 = vpop.f32.mrf.mxu0
    %1220 = vdwg.mxu0
    %v1221 = vmul.f32 %v1050, 0.35355338
    %v1222 = vmul.f32 %v1074, 0.35355338
    %v1223 = vmul.f32 %v1098, 0.35355338
    %v1224 = vmul.f32 %v1122, 0.35355338
    %v1225 = vmul.f32 %v1146, 0.35355338
    %v1226 = vmul.f32 %v1170, 0.35355338
    %v1227 = vmul.f32 %v1194, 0.35355338
    %v1228 = vmul.f32 %v1218, 0.35355338
    %v1229 = vadd.f32 %v1221, %v45
    %v1230 = vadd.f32 %v1222, %v46
    %v1231 = vadd.f32 %v1223, %v47
    %v1232 = vadd.f32 %v1224, %v48
    %v1233 = vadd.f32 %v1225, %v49
    %v1234 = vadd.f32 %v1226, %v50
    %v1235 = vadd.f32 %v1227, %v51
    %v1236 = vadd.f32 %v1228, %v52
    %v1237 = vsel %vm183, %v1229, -inf
    %1238 = vmax.xlane.f32.xlu0 %v1237
    %v1239 = vpop.xlane.xlu0 %1238
    %v1240 = vsel %vm183, %v1230, -inf
    %1241 = vmax.xlane.f32.xlu0 %v1240
    %v1242 = vpop.xlane.xlu0 %1241
    %v1243 = vsel %vm183, %v1231, -inf
    %1244 = vmax.xlane.f32.xlu0 %v1243
    %v1245 = vpop.xlane.xlu0 %1244
    %v1246 = vsel %vm183, %v1232, -inf
    %1247 = vmax.xlane.f32.xlu0 %v1246
    %v1248 = vpop.xlane.xlu0 %1247
    %v1249 = vsel %vm183, %v1233, -inf
    %1250 = vmax.xlane.f32.xlu0 %v1249
    %v1251 = vpop.xlane.xlu0 %1250
    %v1252 = vsel %vm183, %v1234, -inf
    %1253 = vmax.xlane.f32.xlu0 %v1252
    %v1254 = vpop.xlane.xlu0 %1253
    %v1255 = vsel %vm183, %v1235, -inf
    %1256 = vmax.xlane.f32.xlu0 %v1255
    %v1257 = vpop.xlane.xlu0 %1256
    %v1258 = vsel %vm183, %v1236, -inf
    %1259 = vmax.xlane.f32.xlu0 %v1258
    %v1260 = vpop.xlane.xlu0 %1259
    %v1261 = vsub.f32 %v1229, %v1239
    %v1262 = vsub.f32 %v1230, %v1242
    %v1263 = vsub.f32 %v1231, %v1245
    %v1264 = vsub.f32 %v1232, %v1248
    %v1265 = vsub.f32 %v1233, %v1251
    %v1266 = vsub.f32 %v1234, %v1254
    %v1267 = vsub.f32 %v1235, %v1257
    %v1268 = vsub.f32 %v1236, %v1260
    %v1269 = vmul.f32 %v1261, 1.442695
    %v1270 = vpow.pop %v1269
    %v1271 = vmul.f32 %v1262, 1.442695
    %v1272 = vpow.pop %v1271
    %v1273 = vmul.f32 %v1263, 1.442695
    %v1274 = vpow.pop %v1273
    %v1275 = vmul.f32 %v1264, 1.442695
    %v1276 = vpow.pop %v1275
    %v1277 = vmul.f32 %v1265, 1.442695
    %v1278 = vpow.pop %v1277
    %v1279 = vmul.f32 %v1266, 1.442695
    %v1280 = vpow.pop %v1279
    %v1281 = vmul.f32 %v1267, 1.442695
    %v1282 = vpow.pop %v1281
    %v1283 = vmul.f32 %v1268, 1.442695
    %v1284 = vpow.pop %v1283
    %v1285 = vsel %vm183, %v1270, 0.0
    %1286 = vadd.xlane.f32.xlu0 %v1285
    %v1287 = vpop.xlane.xlu0 %1286
    %v1288 = vsel %vm183, %v1272, 0.0
    %1289 = vadd.xlane.f32.xlu0 %v1288
    %v1290 = vpop.xlane.xlu0 %1289
    %v1291 = vsel %vm183, %v1274, 0.0
    %1292 = vadd.xlane.f32.xlu0 %v1291
    %v1293 = vpop.xlane.xlu0 %1292
    %v1294 = vsel %vm183, %v1276, 0.0
    %1295 = vadd.xlane.f32.xlu0 %v1294
    %v1296 = vpop.xlane.xlu0 %1295
    %v1297 = vsel %vm183, %v1278, 0.0
    %1298 = vadd.xlane.f32.xlu0 %v1297
    %v1299 = vpop.xlane.xlu0 %1298
    %v1300 = vsel %vm183, %v1280, 0.0
    %1301 = vadd.xlane.f32.xlu0 %v1300
    %v1302 = vpop.xlane.xlu0 %1301
    %v1303 = vsel %vm183, %v1282, 0.0
    %1304 = vadd.xlane.f32.xlu0 %v1303
    %v1305 = vpop.xlane.xlu0 %1304
    %v1306 = vsel %vm183, %v1284, 0.0
    %1307 = vadd.xlane.f32.xlu0 %v1306
    %v1308 = vpop.xlane.xlu0 %1307
    %v1309 = vrcp.pop %v1287
    %v1310 = vrcp.pop %v1290
    %v1311 = vrcp.pop %v1293
    %v1312 = vrcp.pop %v1296
    %v1313 = vrcp.pop %v1299
    %v1314 = vrcp.pop %v1302
    %v1315 = vrcp.pop %v1305
    %v1316 = vrcp.pop %v1308
    %v1317 = vmul.f32 %v1270, %v1309
    %v1318 = vmul.f32 %v1272, %v1310
    %v1319 = vmul.f32 %v1274, %v1311
    %v1320 = vmul.f32 %v1276, %v1312
    %v1321 = vmul.f32 %v1278, %v1313
    %v1322 = vmul.f32 %v1280, %v1314
    %v1323 = vmul.f32 %v1282, %v1315
    %v1324 = vmul.f32 %v1284, %v1316
    %v1325 = vpack.c.bf16 %v1317, %v1317
    %v1326 = vpack.c.bf16 %v1318, %v1318
    %v1327 = vpack.c.bf16 %v1319, %v1319
    %v1328 = vpack.c.bf16 %v1320, %v1320
    %v1329 = vpack.c.bf16 %v1321, %v1321
    %v1330 = vpack.c.bf16 %v1322, %v1322
    %v1331 = vpack.c.bf16 %v1323, %v1323
    %v1332 = vpack.c.bf16 %v1324, %v1324
    %1333 = vrot.lane.b32.xlu0 %v1031, 64
    %v1334 = vpop.permute.xlu0 %1333
    %v1336 = vsel %vm183, %v1325, 0
    %v1339 = vsel %vm488, %v1334, 0
    %1341 = vmatpush.bf16.msra.mxu0 0
    %1342 = vmatpush.bf16.msra.mxu0 0
    %1343 = vmatpush.bf16.msra.mxu0 0
    %1344 = vmatpush.bf16.msra.mxu0 0
    %1345 = vmatpush.bf16.msra.mxu0 0
    %1346 = vmatpush.bf16.msra.mxu0 0
    %1347 = vmatpush.bf16.msra.mxu0 0
    %1348 = vmatpush.bf16.msra.mxu0 %v1339
    %1349 = vmatmul.bf16.gmra.mxu0 %v1336
    %v1350 = vpop.f32.mrf.mxu0
    %v1351 = vadd.f32 0.0, %v1350
    %v1352 = vpop.f32.mrf.mxu0
    %1353 = vdwg.mxu0
    %1354 = vrot.lane.b32.xlu0 %v1055, 64
    %v1355 = vpop.permute.xlu0 %1354
    %v1357 = vsel %vm183, %v1326, 0
    %v1360 = vsel %vm488, %v1355, 0
    %1362 = vmatpush.bf16.msra.mxu0 0
    %1363 = vmatpush.bf16.msra.mxu0 0
    %1364 = vmatpush.bf16.msra.mxu0 0
    %1365 = vmatpush.bf16.msra.mxu0 0
    %1366 = vmatpush.bf16.msra.mxu0 0
    %1367 = vmatpush.bf16.msra.mxu0 0
    %1368 = vmatpush.bf16.msra.mxu0 0
    %1369 = vmatpush.bf16.msra.mxu0 %v1360
    %1370 = vmatmul.bf16.gmra.mxu0 %v1357
    %v1371 = vpop.f32.mrf.mxu0
    %v1372 = vadd.f32 0.0, %v1371
    %v1373 = vpop.f32.mrf.mxu0
    %1374 = vdwg.mxu0
    %1375 = vrot.lane.b32.xlu0 %v1079, 64
    %v1376 = vpop.permute.xlu0 %1375
    %v1378 = vsel %vm183, %v1327, 0
    %v1381 = vsel %vm488, %v1376, 0
    %1383 = vmatpush.bf16.msra.mxu0 0
    %1384 = vmatpush.bf16.msra.mxu0 0
    %1385 = vmatpush.bf16.msra.mxu0 0
    %1386 = vmatpush.bf16.msra.mxu0 0
    %1387 = vmatpush.bf16.msra.mxu0 0
    %1388 = vmatpush.bf16.msra.mxu0 0
    %1389 = vmatpush.bf16.msra.mxu0 0
    %1390 = vmatpush.bf16.msra.mxu0 %v1381
    %1391 = vmatmul.bf16.gmra.mxu0 %v1378
    %v1392 = vpop.f32.mrf.mxu0
    %v1393 = vadd.f32 0.0, %v1392
    %v1394 = vpop.f32.mrf.mxu0
    %1395 = vdwg.mxu0
    %1396 = vrot.lane.b32.xlu0 %v1103, 64
    %v1397 = vpop.permute.xlu0 %1396
    %v1399 = vsel %vm183, %v1328, 0
    %v1402 = vsel %vm488, %v1397, 0
    %1404 = vmatpush.bf16.msra.mxu0 0
    %1405 = vmatpush.bf16.msra.mxu0 0
    %1406 = vmatpush.bf16.msra.mxu0 0
    %1407 = vmatpush.bf16.msra.mxu0 0
    %1408 = vmatpush.bf16.msra.mxu0 0
    %1409 = vmatpush.bf16.msra.mxu0 0
    %1410 = vmatpush.bf16.msra.mxu0 0
    %1411 = vmatpush.bf16.msra.mxu0 %v1402
    %1412 = vmatmul.bf16.gmra.mxu0 %v1399
    %v1413 = vpop.f32.mrf.mxu0
    %v1414 = vadd.f32 0.0, %v1413
    %v1415 = vpop.f32.mrf.mxu0
    %1416 = vdwg.mxu0
    %1417 = vrot.lane.b32.xlu0 %v1127, 64
    %v1418 = vpop.permute.xlu0 %1417
    %v1420 = vsel %vm183, %v1329, 0
    %v1423 = vsel %vm488, %v1418, 0
    %1425 = vmatpush.bf16.msra.mxu0 0
    %1426 = vmatpush.bf16.msra.mxu0 0
    %1427 = vmatpush.bf16.msra.mxu0 0
    %1428 = vmatpush.bf16.msra.mxu0 0
    %1429 = vmatpush.bf16.msra.mxu0 0
    %1430 = vmatpush.bf16.msra.mxu0 0
    %1431 = vmatpush.bf16.msra.mxu0 0
    %1432 = vmatpush.bf16.msra.mxu0 %v1423
    %1433 = vmatmul.bf16.gmra.mxu0 %v1420
    %v1434 = vpop.f32.mrf.mxu0
    %v1435 = vadd.f32 0.0, %v1434
    %v1436 = vpop.f32.mrf.mxu0
    %1437 = vdwg.mxu0
    %1438 = vrot.lane.b32.xlu0 %v1151, 64
    %v1439 = vpop.permute.xlu0 %1438
    %v1441 = vsel %vm183, %v1330, 0
    %v1444 = vsel %vm488, %v1439, 0
    %1446 = vmatpush.bf16.msra.mxu0 0
    %1447 = vmatpush.bf16.msra.mxu0 0
    %1448 = vmatpush.bf16.msra.mxu0 0
    %1449 = vmatpush.bf16.msra.mxu0 0
    %1450 = vmatpush.bf16.msra.mxu0 0
    %1451 = vmatpush.bf16.msra.mxu0 0
    %1452 = vmatpush.bf16.msra.mxu0 0
    %1453 = vmatpush.bf16.msra.mxu0 %v1444
    %1454 = vmatmul.bf16.gmra.mxu0 %v1441
    %v1455 = vpop.f32.mrf.mxu0
    %v1456 = vadd.f32 0.0, %v1455
    %v1457 = vpop.f32.mrf.mxu0
    %1458 = vdwg.mxu0
    %1459 = vrot.lane.b32.xlu0 %v1175, 64
    %v1460 = vpop.permute.xlu0 %1459
    %v1462 = vsel %vm183, %v1331, 0
    %v1465 = vsel %vm488, %v1460, 0
    %1467 = vmatpush.bf16.msra.mxu0 0
    %1468 = vmatpush.bf16.msra.mxu0 0
    %1469 = vmatpush.bf16.msra.mxu0 0
    %1470 = vmatpush.bf16.msra.mxu0 0
    %1471 = vmatpush.bf16.msra.mxu0 0
    %1472 = vmatpush.bf16.msra.mxu0 0
    %1473 = vmatpush.bf16.msra.mxu0 0
    %1474 = vmatpush.bf16.msra.mxu0 %v1465
    %1475 = vmatmul.bf16.gmra.mxu0 %v1462
    %v1476 = vpop.f32.mrf.mxu0
    %v1477 = vadd.f32 0.0, %v1476
    %v1478 = vpop.f32.mrf.mxu0
    %1479 = vdwg.mxu0
    %1480 = vrot.lane.b32.xlu0 %v1199, 64
    %v1481 = vpop.permute.xlu0 %1480
    %v1483 = vsel %vm183, %v1332, 0
    %v1486 = vsel %vm488, %v1481, 0
    %1488 = vmatpush.bf16.msra.mxu0 0
    %1489 = vmatpush.bf16.msra.mxu0 0
    %1490 = vmatpush.bf16.msra.mxu0 0
    %1491 = vmatpush.bf16.msra.mxu0 0
    %1492 = vmatpush.bf16.msra.mxu0 0
    %1493 = vmatpush.bf16.msra.mxu0 0
    %1494 = vmatpush.bf16.msra.mxu0 0
    %1495 = vmatpush.bf16.msra.mxu0 %v1486
    %1496 = vmatmul.bf16.gmra.mxu0 %v1483
    %v1497 = vpop.f32.mrf.mxu0
    %v1498 = vadd.f32 0.0, %v1497
    %v1499 = vpop.f32.mrf.mxu0
    %1500 = vdwg.mxu0
    %1503 = vrot.lane.b32.xlu0 %v1393, 8
    %v1504 = vpop.permute.xlu0 %1503
    %1505 = vrot.lane.b32.xlu0 %v1414, 8
    %v1506 = vpop.permute.xlu0 %1505
    %1511 = vrot.lane.b32.xlu0 %v1435, 16
    %v1512 = vpop.permute.xlu0 %1511
    %1513 = vrot.lane.b32.xlu0 %v1456, 16
    %v1514 = vpop.permute.xlu0 %1513
    %1519 = vrot.lane.b32.xlu0 %v1477, 24
    %v1520 = vpop.permute.xlu0 %1519
    %1521 = vrot.lane.b32.xlu0 %v1498, 24
    %v1522 = vpop.permute.xlu0 %1521
    %v1525 = vsel %vm183, %v1351, %v1504
    %v1526 = vsel %vm183, %v1372, %v1506
    %v1527 = vsel %vm678, %v1525, %v1512
    %v1528 = vsel %vm678, %v1526, %v1514
    %v1529 = vsel %vm681, %v1527, %v1520
    %v1530 = vsel %vm681, %v1528, %v1522
    %v1531 = vpack.c.bf16 %v1530, %v1529
    %s1532 = scalar_lea.vmem %s6, 16
    %v1533 = vld [vmem:[%s1532] sm:$0xf]
    %v1534 = vld [vmem:[%s1532 + $0x4] sm:$0xf]
    %v1535 = vld [vmem:[%s1532 + $0x8] sm:$0xf]
    %v1536 = vld [vmem:[%s1532 + $0xc] sm:$0xf]
    %v1537 = vperm.slane %v910, 4
    %v1542 = vunpack.c.l.b16 %v1533
    %v1543 = vunpack.c.l.b16 %v1534
    %v1544 = vunpack.c.l.b16 %v1535
    %v1545 = vunpack.c.l.b16 %v1536
    %v1546 = vpack.c.b16 %v1543, %v1542
    %v1547 = vpack.c.b16 %v1545, %v1544
    %v1551 = vsel %vm54, %v1531, 0
    %1553 = vmatpush.bf16.msra.mxu0 0
    %1554 = vmatpush.bf16.msra.mxu0 0
    %1555 = vmatpush.bf16.msra.mxu0 0
    %1556 = vmatpush.bf16.msra.mxu0 0
    %1557 = vmatpush.bf16.msra.mxu0 0
    %1558 = vmatpush.bf16.msra.mxu0 0
    %1559 = vmatpush.bf16.msra.mxu0 %v1547
    %1560 = vmatpush.bf16.msra.mxu0 %v1546
    %1561 = vmatmul.bf16.gmra.mxu0 %v1551
    %v1562 = vpop.f32.mrf.mxu0
    %v1563 = vadd.f32 %v1537, %v1562
    %v1564 = vpop.f32.mrf.mxu0
    %v1565 = vadd.f32 %v1537, %v1564
    %1566 = vdwg.mxu0
    %v1567 = vadd.f32 %v907, %v1563
    %v1568 = vadd.f32 %v908, %v1565
    %v1569 = vsel %vm54, %v1567, 0.0
    %1570 = vadd.xlane.f32.xlu0 %v1569
    %v1571 = vpop.xlane.xlu0 %1570
    %v1572 = vsel %vm54, %v1568, 0.0
    %1573 = vadd.xlane.f32.xlu0 %v1572
    %v1574 = vpop.xlane.xlu0 %1573
    %v1575 = vmul.f32 %v1571, %v67
    %v1576 = vmul.f32 %v1574, %v67
    %v1577 = vsub.f32 %v1567, %v1575
    %v1578 = vsub.f32 %v1568, %v1576
    %v1579 = vmul.f32 %v1577, %v1577
    %v1580 = vmul.f32 %v1578, %v1578
    %v1581 = vsel %vm54, %v1579, 0.0
    %1582 = vadd.xlane.f32.xlu0 %v1581
    %v1583 = vpop.xlane.xlu0 %1582
    %v1584 = vsel %vm54, %v1580, 0.0
    %1585 = vadd.xlane.f32.xlu0 %v1584
    %v1586 = vpop.xlane.xlu0 %1585
    %v1587 = vmul.f32 %v1583, %v67
    %v1588 = vmul.f32 %v1586, %v67
    %v1589 = vadd.f32 %v1587, 1e-05
    %v1590 = vadd.f32 %v1588, 1e-05
    %v1591 = vrsqrt.pop %v1589
    %v1592 = vmul.f32 %v1591, %v1589
    %v1593 = vmul.f32 %v1592, %v1591
    %v1594 = vmul.f32 0.5, %v1593
    %v1595 = vsub.f32 1.5, %v1594
    %v1596 = vmul.f32 %v1591, %v1595
    %vm1597 = vweird.f32 %v1589
    %vm1598 = vweird.f32 %v1591
    %vm1599 = vmor %vm1597, %vm1598
    %v1600 = vsel %vm1599, %v1591, %v1596
    %v1601 = vrsqrt.pop %v1590
    %v1602 = vmul.f32 %v1601, %v1590
    %v1603 = vmul.f32 %v1602, %v1601
    %v1604 = vmul.f32 0.5, %v1603
    %v1605 = vsub.f32 1.5, %v1604
    %v1606 = vmul.f32 %v1601, %v1605
    %vm1607 = vweird.f32 %v1590
    %vm1608 = vweird.f32 %v1601
    %vm1609 = vmor %vm1607, %vm1608
    %v1610 = vsel %vm1609, %v1601, %v1606
    %v1611 = vmul.f32 %v1577, %v1600
    %v1612 = vmul.f32 %v1578, %v1610
    %v1613 = vperm.slane %v910, 2
    %v1614 = vmul.f32 %v1611, %v1613
    %v1615 = vmul.f32 %v1612, %v1613
    %v1616 = vperm.slane %v910, 3
    %v1617 = vadd.f32 %v1614, %v1616
    %v1618 = vadd.f32 %v1615, %v1616
    %v1619 = vpack.c.bf16 %v1618, %v1617
    %s1620 = scalar_lea.vmem %s7, 16
    %v1621 = vld [vmem:[%s1620] sm:$0xf]
    %v1622 = vld [vmem:[%s1620 + $0x4] sm:$0xf]
    %v1623 = vld [vmem:[%s1620 + $0x8] sm:$0xf]
    %v1624 = vld [vmem:[%s1620 + $0xc] sm:$0xf]
    %s1625 = scalar_lea.vmem %s8, 1
    %v1626 = vld [vmem:[%s1625] sm:$0x1]
    %v1628 = vperm.slane %v1626, 0
    %v1634 = vunpack.c.l.b16 %v1621
    %v1635 = vunpack.c.l.b16 %v1622
    %v1636 = vunpack.c.l.b16 %v1623
    %v1637 = vunpack.c.l.b16 %v1624
    %v1638 = vpack.c.b16 %v1635, %v1634
    %v1639 = vpack.c.b16 %v1637, %v1636
    %v1643 = vsel %vm54, %v1619, 0
    %1645 = vmatpush.bf16.msra.mxu0 0
    %1646 = vmatpush.bf16.msra.mxu0 0
    %1647 = vmatpush.bf16.msra.mxu0 0
    %1648 = vmatpush.bf16.msra.mxu0 0
    %1649 = vmatpush.bf16.msra.mxu0 0
    %1650 = vmatpush.bf16.msra.mxu0 0
    %1651 = vmatpush.bf16.msra.mxu0 %v1639
    %1652 = vmatpush.bf16.msra.mxu0 %v1638
    %1653 = vmatmul.bf16.gmra.mxu0 %v1643
    %v1654 = vpop.f32.mrf.mxu0
    %v1655 = vadd.f32 %v1628, %v1654
    %v1656 = vpop.f32.mrf.mxu0
    %v1657 = vadd.f32 %v1628, %v1656
    %1658 = vdwg.mxu0
    %v1659 = vmul.f32 %v1655, 0.5
    %v1660 = vmul.f32 %v1657, 0.5
    %v1661 = vmul.f32 %v1655, 0.044715
    %v1662 = vmul.f32 %v1657, 0.044715
    %v1663 = vmul.f32 %v1661, %v1655
    %v1664 = vmul.f32 %v1662, %v1657
    %v1665 = vmul.f32 %v1663, %v1655
    %v1666 = vmul.f32 %v1664, %v1657
    %v1667 = vadd.f32 %v1655, %v1665
    %v1668 = vadd.f32 %v1657, %v1666
    %v1669 = vmul.f32 %v1667, 0.7978846
    %v1670 = vmul.f32 %v1668, 0.7978846
    %v1671 = vtanh.pop %v1669
    %v1672 = vtanh.pop %v1670
    %v1673 = vadd.f32 %v1671, 1.0
    %v1674 = vadd.f32 %v1672, 1.0
    %v1675 = vmul.f32 %v1659, %v1673
    %v1676 = vmul.f32 %v1660, %v1674
    %v1677 = vpack.c.bf16 %v1676, %v1675
    %s1678 = scalar_lea.vmem %s9, 64
    %v1679 = vld [vmem:[%s1678] sm:$0xf]
    %v1680 = vld [vmem:[%s1678 + $0x4] sm:$0xf]
    %v1681 = vld [vmem:[%s1678 + $0x8] sm:$0xf]
    %v1682 = vld [vmem:[%s1678 + $0xc] sm:$0xf]
    %v1683 = vld [vmem:[%s1678 + $0x10] sm:$0xf]
    %v1684 = vld [vmem:[%s1678 + $0x14] sm:$0xf]
    %v1685 = vld [vmem:[%s1678 + $0x18] sm:$0xf]
    %v1686 = vld [vmem:[%s1678 + $0x1c] sm:$0xf]
    %v1687 = vld [vmem:[%s1678 + $0x20] sm:$0xf]
    %v1688 = vld [vmem:[%s1678 + $0x24] sm:$0xf]
    %v1689 = vld [vmem:[%s1678 + $0x28] sm:$0xf]
    %v1690 = vld [vmem:[%s1678 + $0x2c] sm:$0xf]
    %v1691 = vld [vmem:[%s1678 + $0x30] sm:$0xf]
    %v1692 = vld [vmem:[%s1678 + $0x34] sm:$0xf]
    %v1693 = vld [vmem:[%s1678 + $0x38] sm:$0xf]
    %v1694 = vld [vmem:[%s1678 + $0x3c] sm:$0xf]
    %v1695 = vperm.slane %v910, 5
    %v1712 = vunpack.c.l.b16 %v1679
    %v1713 = vunpack.c.l.b16 %v1680
    %v1714 = vunpack.c.l.b16 %v1681
    %v1715 = vunpack.c.l.b16 %v1682
    %v1716 = vunpack.c.l.b16 %v1683
    %v1717 = vunpack.c.l.b16 %v1684
    %v1718 = vunpack.c.l.b16 %v1685
    %v1719 = vunpack.c.l.b16 %v1686
    %v1720 = vunpack.c.l.b16 %v1687
    %v1721 = vunpack.c.l.b16 %v1688
    %v1722 = vunpack.c.l.b16 %v1689
    %v1723 = vunpack.c.l.b16 %v1690
    %v1724 = vunpack.c.l.b16 %v1691
    %v1725 = vunpack.c.l.b16 %v1692
    %v1726 = vunpack.c.l.b16 %v1693
    %v1727 = vunpack.c.l.b16 %v1694
    %v1728 = vpack.c.b16 %v1713, %v1712
    %v1729 = vpack.c.b16 %v1715, %v1714
    %v1730 = vpack.c.b16 %v1717, %v1716
    %v1731 = vpack.c.b16 %v1719, %v1718
    %v1732 = vpack.c.b16 %v1721, %v1720
    %v1733 = vpack.c.b16 %v1723, %v1722
    %v1734 = vpack.c.b16 %v1725, %v1724
    %v1735 = vpack.c.b16 %v1727, %v1726
    %1744 = vmatpush.bf16.msra.mxu0 %v1735
    %1745 = vmatpush.bf16.msra.mxu0 %v1734
    %1746 = vmatpush.bf16.msra.mxu0 %v1733
    %1747 = vmatpush.bf16.msra.mxu0 %v1732
    %1748 = vmatpush.bf16.msra.mxu0 %v1731
    %1749 = vmatpush.bf16.msra.mxu0 %v1730
    %1750 = vmatpush.bf16.msra.mxu0 %v1729
    %1751 = vmatpush.bf16.msra.mxu0 %v1728
    %1752 = vmatmul.bf16.gmra.mxu0 %v1677
    %v1753 = vpop.f32.mrf.mxu0
    %v1754 = vadd.f32 %v1695, %v1753
    %v1755 = vpop.f32.mrf.mxu0
    %v1756 = vadd.f32 %v1695, %v1755
    %1757 = vdwg.mxu0
    %v1758 = vadd.f32 %v1567, %v1754
    %v1759 = vadd.f32 %v1568, %v1756
    %v1760 = vld [vmem:[%s2] sm:$0x3]
    %v1762 = vsel %vm678, %v1760, 0
    %1764 = vmatpush.msra.mxu0 0.0
    %1765 = vmatpush.msra.mxu0 0.0
    %1766 = vmatpush.msra.mxu0 0.0
    %1767 = vmatpush.msra.mxu0 0.0
    %1768 = vmatpush.msra.mxu0 0.0
    %1769 = vmatpush.msra.mxu0 0.0
    %1770 = vmatpush.msra.mxu0 0.0
    %1771 = vmatpush.msra.mxu0 0.0
    %1772 = vmatpush.msra.mxu0 0.0
    %1773 = vmatpush.msra.mxu0 0.0
    %1774 = vmatpush.msra.mxu0 0.0
    %1775 = vmatpush.msra.mxu0 0.0
    %1776 = vmatpush.msra.mxu0 0.0
    %1777 = vmatpush.msra.mxu0 0.0
    %1778 = vmatpush.msra.mxu0 %v1759
    %1779 = vmatpush.msra.mxu0 %v1758
    %1780 = vmatmul.f32.gmra.mxu0 %v1762
    %v1781 = vpop.f32.mrf.mxu0
    %v1782 = vadd.f32 0.0, %v1781
    %1783 = vdwg.mxu0
    %v1784 = vld [vmem:[%s10] sm:$0x1]
    %v1785 = vld [vmem:[%s10 + $0x1] sm:$0x1]
    %vm1786 = vcmask 254976
    %v1787 = vsel %vm1786, %v1782, 0.0
    %1788 = vadd.xlane.f32.xlu0 %v1787
    %v1789 = vpop.xlane.xlu0 %1788
    %v1790 = vmul.f32 %v1789, %v67
    %v1791 = vsub.f32 %v1782, %v1790
    %v1792 = vmul.f32 %v1791, %v1791
    %v1793 = vsel %vm1786, %v1792, 0.0
    %1794 = vadd.xlane.f32.xlu0 %v1793
    %v1795 = vpop.xlane.xlu0 %1794
    %v1796 = vmul.f32 %v1795, %v67
    %v1797 = vadd.f32 %v1796, 1e-05
    %v1798 = vrsqrt.pop %v1797
    %v1799 = vmul.f32 %v1798, %v1797
    %v1800 = vmul.f32 %v1799, %v1798
    %v1801 = vmul.f32 0.5, %v1800
    %v1802 = vsub.f32 1.5, %v1801
    %v1803 = vmul.f32 %v1798, %v1802
    %vm1804 = vweird.f32 %v1797
    %vm1805 = vweird.f32 %v1798
    %vm1806 = vmor %vm1804, %vm1805
    %v1807 = vsel %vm1806, %v1798, %v1803
    %v1808 = vmul.f32 %v1791, %v1807
    %v1809 = vperm.slane %v1784, 0
    %v1810 = vmul.f32 %v1808, %v1809
    %v1811 = vperm.slane %v1785, 0
    %v1812 = vadd.f32 %v1810, %v1811
    %v1813 = vpack.c.bf16 %v1812, %v1812
    %v1814 = vld [vmem:[%s11] sm:$0xf]
    %v1815 = vld [vmem:[%s11 + $0x4] sm:$0xf]
    %v1816 = vld [vmem:[%s11 + $0x8] sm:$0xf]
    %v1817 = vld [vmem:[%s11 + $0xc] sm:$0xf]
    %v1822 = vunpack.c.l.b16 %v1814
    %v1823 = vunpack.c.l.b16 %v1815
    %v1824 = vunpack.c.l.b16 %v1816
    %v1825 = vunpack.c.l.b16 %v1817
    %v1826 = vpack.c.b16 %v1823, %v1822
    %v1827 = vpack.c.b16 %v1825, %v1824
    %v1831 = vsel %vm54, %v1813, 0
    %1833 = vmatpush.bf16.msra.mxu0 0
    %1834 = vmatpush.bf16.msra.mxu0 0
    %1835 = vmatpush.bf16.msra.mxu0 0
    %1836 = vmatpush.bf16.msra.mxu0 0
    %1837 = vmatpush.bf16.msra.mxu0 0
    %1838 = vmatpush.bf16.msra.mxu0 0
    %1839 = vmatpush.bf16.msra.mxu0 %v1827
    %1840 = vmatpush.bf16.msra.mxu0 %v1826
    %1841 = vmatmul.bf16.gmra.mxu0 %v1831
    %v1842 = vpop.f32.mrf.mxu0
    %v1843 = vadd.f32 0.0, %v1842
    %v1844 = vpop.f32.mrf.mxu0
    %1845 = vdwg.mxu0
    %1846 = vst [vmem:[#allocation2] sm:$0x3] %v1843
    // Predicated region
    $region50: #{_lambda_.1} parent=1 // pred_check
      _
    $region51: #{_lambda_.1} parent=1 // pred_check_branch
      %1848 = sbr.rel (0) target = $region53
    $region52: #{_lambda_.1} parent=1 // pred_region
      %1850 = vsyncadd [#allocation3], 0
      %s1852 = sshll.u32 [#allocation2], 4
      %s1853 = int_to_ptr.vmem [resolvable:$true] %s1852
      %s1854 = sshll.u32 %s12, 4
      %s1855 = int_to_ptr.hbm [resolvable:$true] %s1854
      %1857 = dma.vmem_to_hbm [thread:$0]  %s1853, 32, %s1855, [#allocation3]
    $region53: #{_lambda_.1} parent=1 // pred_fallthru
      _
    // Predicated region
    $region54: #{_lambda_.1} parent=1 // pred_check
      _
    $region55: #{_lambda_.1} parent=1 // pred_check_branch
      %1859 = sbr.rel (0) target = $region57
    $region56: #{_lambda_.1} parent=1 // pred_region
      %1861 = dma.done [#allocation3], 32
    $region57: #{_lambda_.1} parent=1 // pred_fallthru
      _
    %1862 = vsyncpa [#allocation3], 1

</llo_original>
